<compile_context>
chip_gen: v7x
topology: tpu7x:2x2x1
jax: 0.10.0
libtpu: 0.0.40
codegen_flags: <defaults>
</compile_context>

<pallas_src>
import jax
import jax.numpy as jnp
import numpy as np
from jax import lax
from jax.experimental import pallas as pl
from jax.experimental.pallas import tpu as pltpu


def _sga_kernel(x_ref, g1_ref, g2_ref, g3_ref, g4_ref,
                y_ref, stats_ref, xt_ref, acc_ref, kt_ref):
    """Semi-global aggregation for one (batch, channel) slice.

    x_ref    : (D, H, W) cost slice
    g*_ref   : (5, H, W) raw (un-normalized) guidance weights, one ref per direction
    y_ref    : (D, H, W) output = max over the 4 directional aggregations
    stats_ref: (2, 128)  per-(b,c) [sum, sum-of-squares] of y (value broadcast over lanes)
    xt_ref   : (D, W, H) scratch -- x with H/W swapped so the W scans read lane-dense rows
    acc_ref  : (D, W, H) scratch -- running max of the two W-direction aggregations
    kt_ref   : (5, W, H) scratch -- H/W-swapped guidance weights for the current W scan
    """
    D, H, W = x_ref.shape

    def norm5(k):
        # F.normalize(p=1) over the 5 weights (the leading axis of these slabs).
        k = k.astype(jnp.float32)
        denom = jnp.maximum(jnp.sum(jnp.abs(k), axis=0, keepdims=True), 1e-12)
        return k / denom

    def sga_step(xc, wc, prev):
        # GA-Net SGA recurrence (weights sum to 1 over the 5 terms):
        #   C_r(p,d) = w0*C(p,d) + w1*C_r(p-r,d) + w2*C_r(p-r,d-1)
        #            + w3*C_r(p-r,d+1) + w4*max_d' C_r(p-r,d')
        # D is the leading (non-vreg) axis, so the d-shifts / max-over-d are cheap
        # (vreg re-indexing + lane-parallel maxes, no cross-lane work).
        zero = jnp.zeros_like(prev[:1])
        dm1 = jnp.concatenate([zero, prev[:-1]], axis=0)
        dp1 = jnp.concatenate([prev[1:], zero], axis=0)
        mx = jnp.max(prev, axis=0, keepdims=True)
        return (wc[0:1] * xc + wc[1:2] * prev + wc[2:3] * dm1
                + wc[3:4] * dp1 + wc[4:5] * mx)

    # ---- stage x with H/W swapped: xt[d, w, h] = x[d, h, w] (per-d minor transpose) ----
    def _stage_x(d, carry):
        xt_ref[d] = x_ref[d].astype(jnp.float32).T
        return carry
    lax.fori_loop(0, D, _stage_x, 0)

    def stage_kt(g_ref):
        for j in range(5):                                   # tiny static unroll
            kt_ref[j] = g_ref[j].astype(jnp.float32).T

    # ---- W-direction scans (scan axis = W axis of xt/acc; lane axis = H, dense) ----
    def w_scan(reverse, first):
        def body(sidx, prev):
            i = (W - 1 - sidx) if reverse else sidx
            xc = xt_ref[:, pl.ds(i, 1), :]                   # (D, 1, H) lane-dense row
            wc = norm5(kt_ref[:, pl.ds(i, 1), :])            # (5, 1, H)
            cur = sga_step(xc, wc, prev)
            if first:
                acc_ref[:, pl.ds(i, 1), :] = cur
            else:
                acc_ref[:, pl.ds(i, 1), :] = jnp.maximum(acc_ref[:, pl.ds(i, 1), :], cur)
            return cur
        # TODO(synk): boundary convention assumed: previous aggregation treated as 0 at the
        # first position and out-of-range d terms are 0; GA-Net's CUDA op may differ.
        lax.fori_loop(0, W, body, jnp.zeros((D, 1, H), jnp.float32))

    stage_kt(g1_ref)
    w_scan(reverse=False, first=True)                        # left  -> right
    stage_kt(g2_ref)
    w_scan(reverse=True, first=False)                        # right -> left

    # acc (D, W, H)  ->  y (D, H, W)
    def _untranspose(d, carry):
        y_ref[d] = acc_ref[d].T
        return carry
    lax.fori_loop(0, D, _untranspose, 0)

    # ---- H-direction scans: x_ref rows are already lane-dense in W ----
    def h_scan(g_ref, reverse):
        def body(sidx, prev):
            i = (H - 1 - sidx) if reverse else sidx
            xc = x_ref[:, pl.ds(i, 1), :].astype(jnp.float32)   # (D, 1, W) lane-dense row
            wc = norm5(g_ref[:, pl.ds(i, 1), :])                # (5, 1, W)
            cur = sga_step(xc, wc, prev)
            y_ref[:, pl.ds(i, 1), :] = jnp.maximum(y_ref[:, pl.ds(i, 1), :], cur)
            return cur
        lax.fori_loop(0, H, body, jnp.zeros((D, 1, W), jnp.float32))

    h_scan(g3_ref, reverse=False)                            # top -> down

    # The last direction also accumulates the BatchNorm partials of the finished rows,
    # so the wrapper never has to re-read y from HBM for the statistics.
    def h_scan_last_with_stats(g_ref):
        def body(sidx, carry):
            prev, sv, ssv = carry
            i = H - 1 - sidx                                 # down -> up
            xc = x_ref[:, pl.ds(i, 1), :].astype(jnp.float32)
            wc = norm5(g_ref[:, pl.ds(i, 1), :])
            cur = sga_step(xc, wc, prev)
            merged = jnp.maximum(y_ref[:, pl.ds(i, 1), :], cur)
            y_ref[:, pl.ds(i, 1), :] = merged
            return (cur,
                    sv + jnp.sum(merged, axis=0),
                    ssv + jnp.sum(merged * merged, axis=0))
        init = (jnp.zeros((D, 1, W), jnp.float32),
                jnp.zeros((1, W), jnp.float32),
                jnp.zeros((1, W), jnp.float32))
        _, sv, ssv = lax.fori_loop(0, H, body, init)
        return sv, ssv

    sv, ssv = h_scan_last_with_stats(g4_ref)
    s_tot = jnp.sum(sv, axis=1, keepdims=True)               # (1, 1)
    ss_tot = jnp.sum(ssv, axis=1, keepdims=True)             # (1, 1)
    stats_ref[0:1, :] = jnp.broadcast_to(s_tot, (1, 128))
    stats_ref[1:2, :] = jnp.broadcast_to(ss_tot, (1, 128))


def _bn_add_relu_kernel(scale_ref, shift_ref, y_ref, x_ref, o_ref):
    """Fused BN-apply (precomputed per-channel scale/shift in SMEM) + residual + ReLU."""
    c = pl.program_id(1)
    s = scale_ref[c]
    t = shift_ref[c]
    out = y_ref[...] * s + t + x_ref[...].astype(jnp.float32)
    o_ref[...] = jnp.maximum(out, 0.0).astype(o_ref.dtype)


def sga_block_forward(x, g, gamma, beta, *, eps=1e-5):
    """SGABlock(channels=C, refine=False).forward(x, g) in training mode."""
    # TODO(synk): refine=True branch (BN+ReLU then 3x3x3 Conv3d + BN) is not implemented;
    # the module-default refine=False path is reproduced here.
    B, C, D, H, W = x.shape
    assert g.shape == (B, 20 * C, H, W)

    vmem_limit = 64 * 1024 * 1024

    x_spec = pl.BlockSpec((None, None, D, H, W), lambda b, c: (b, c, 0, 0, 0))

    def g_spec(direction):
        # g channel layout: direction-major, then channel, then the 5 weights:
        #   k_dir[b, c, j] == g[b, direction*5*C + c*5 + j]
        # The channel-axis block index is in units of 5 channels.
        return pl.BlockSpec((None, 5, H, W),
                            lambda b, c: (b, direction * C + c, 0, 0))

    stats_spec = pl.BlockSpec((None, None, 2, 128), lambda b, c: (b, c, 0, 0))

    # TODO(synk): at full GA-Net sizes (D~48, H~240, W~528) the per-(b,c) slice plus the two
    # (D, W, H) scratches exceed v7x's 64 MiB VMEM; tile the non-scanned spatial axis in the
    # grid (carrying scan state across steps) before running at those sizes.
    y, stats = pl.pallas_call(
        _sga_kernel,
        out_shape=(jax.ShapeDtypeStruct((B, C, D, H, W), jnp.float32),
                   jax.ShapeDtypeStruct((B, C, 2, 128), jnp.float32)),
        grid=(B, C),
        in_specs=[x_spec, g_spec(0), g_spec(1), g_spec(2), g_spec(3)],
        out_specs=(x_spec, stats_spec),
        scratch_shapes=[pltpu.VMEM((D, W, H), jnp.float32),
                        pltpu.VMEM((D, W, H), jnp.float32),
                        pltpu.VMEM((5, W, H), jnp.float32)],
        compiler_params=pltpu.CompilerParams(
            dimension_semantics=("parallel", "parallel"),
            vmem_limit_bytes=vmem_limit),
    )(x, g, g, g, g)

    # Fold the per-(b,c) partials into per-channel affine BN parameters (tiny, pure JAX).
    n = float(B * D * H * W)
    sum_c = jnp.sum(stats[:, :, 0, 0], axis=0)               # (C,)
    sumsq_c = jnp.sum(stats[:, :, 1, 0], axis=0)             # (C,)
    mean = sum_c / n
    var = jnp.maximum(sumsq_c / n - mean * mean, 0.0)        # biased variance (training mode)
    inv_std = jax.lax.rsqrt(var + eps)
    scale = gamma.astype(jnp.float32) * inv_std
    shift = beta.astype(jnp.float32) - mean * scale

    # Elementwise BN-apply + residual + ReLU in the natural layout (free reshapes only);
    # flatten D*H*W so the last dim is a lane-dense multiple of 128 when possible.
    DHW = D * H * W
    if DHW % 128 == 0:
        rows, lanes = DHW // 128, 128
    else:
        rows, lanes = D * H, W
    row_chunk = min(rows, 2048)
    nchunks = pl.cdiv(rows, row_chunk)

    y_r = y.reshape(B, C, rows, lanes)
    x_r = x.reshape(B, C, rows, lanes)

    tile = pl.BlockSpec((None, None, row_chunk, lanes), lambda b, c, i: (b, c, i, 0))
    smem = pl.BlockSpec(memory_space=pltpu.MemorySpace.SMEM)

    out_r = pl.pallas_call(
        _bn_add_relu_kernel,
        out_shape=jax.ShapeDtypeStruct((B, C, rows, lanes), x.dtype),
        grid=(B, C, nchunks),
        in_specs=[smem, smem, tile, tile],
        out_specs=tile,
        compiler_params=pltpu.CompilerParams(
            dimension_semantics=("parallel", "parallel", "parallel"),
            vmem_limit_bytes=vmem_limit),
    )(scale, shift, y_r, x_r)

    return out_r.reshape(B, C, D, H, W)


def sga_block_reference(x, g, gamma, beta, *, eps=1e-5):
    """Pure-JAX reference with identical semantics (for validation)."""
    B, C, D, H, W = x.shape
    xf = x.astype(jnp.float32)
    k = g.astype(jnp.float32).reshape(B, 4, C, 5, H, W)
    k = k / jnp.maximum(jnp.sum(jnp.abs(k), axis=3, keepdims=True), 1e-12)
    k1, k2, k3, k4 = k[:, 0], k[:, 1], k[:, 2], k[:, 3]

    def step(xc, wc, prev):
        if prev is None:
            return wc[:, :, 0:1] * xc
        zero = jnp.zeros_like(prev[:, :, :1])
        dm1 = jnp.concatenate([zero, prev[:, :, :-1]], axis=2)
        dp1 = jnp.concatenate([prev[:, :, 1:], zero], axis=2)
        mx = jnp.max(prev, axis=2, keepdims=True)
        return (wc[:, :, 0:1] * xc + wc[:, :, 1:2] * prev + wc[:, :, 2:3] * dm1
                + wc[:, :, 3:4] * dp1 + wc[:, :, 4:5] * mx)

    def scan_w(kk, reverse):
        order = range(W - 1, -1, -1) if reverse else range(W)
        cols = [None] * W
        prev = None
        for i in order:
            prev = step(xf[..., i], kk[..., i], prev)
            cols[i] = prev
        return jnp.stack(cols, axis=-1)

    def scan_h(kk, reverse):
        order = range(H - 1, -1, -1) if reverse else range(H)
        rows = [None] * H
        prev = None
        for i in order:
            prev = step(xf[..., i, :], kk[..., i, :], prev)
            rows[i] = prev
        return jnp.stack(rows, axis=-2)

    y = jnp.maximum(jnp.maximum(scan_w(k1, False), scan_w(k2, True)),
                    jnp.maximum(scan_h(k3, False), scan_h(k4, True)))

    mean = jnp.mean(y, axis=(0, 2, 3, 4), keepdims=True)
    var = jnp.mean((y - mean) ** 2, axis=(0, 2, 3, 4), keepdims=True)
    yn = (gamma.reshape(1, C, 1, 1, 1) * (y - mean) * jax.lax.rsqrt(var + eps)
          + beta.reshape(1, C, 1, 1, 1))
    return jnp.maximum(yn + xf, 0.0)


if __name__ == "__main__":
    key = jax.random.PRNGKey(0)
    B, C, D, H, W = 2, 4, 8, 16, 16          # channels=C, disparity D, spatial H x W
    kx, kg, kgm, kb = jax.random.split(key, 4)

    x = jax.random.normal(kx, (B, C, D, H, W), jnp.float32)      # cost volume
    g = jax.random.normal(kg, (B, 20 * C, H, W), jnp.float32)    # guidance (4 dirs x 5 x C)
    # BatchNorm3d parameters (a freshly-initialized module would be 1 / 0).
    gamma = 1.0 + 0.1 * jax.random.normal(kgm, (C,), jnp.float32)
    beta = 0.1 * jax.random.normal(kb, (C,), jnp.float32)

    out = jax.block_until_ready(sga_block_forward(x, g, gamma, beta))

    ref = sga_block_reference(x, g, gamma, beta)
    np.testing.assert_allclose(np.asarray(out), np.asarray(ref), rtol=1e-3, atol=1e-3)

    print("KERNEL_OK")
</pallas_src>

<mosaic_0001>
module attributes {stable_mosaic.version = 11 : i64} {
  func.func @_sga_kernel(%arg0: i32, %arg1: i32, %arg2: memref<1x1x8x16x16xf32, #tpu.memory_space<vmem>>, %arg3: memref<1x5x16x16xf32, #tpu.memory_space<vmem>>, %arg4: memref<1x5x16x16xf32, #tpu.memory_space<vmem>>, %arg5: memref<1x5x16x16xf32, #tpu.memory_space<vmem>>, %arg6: memref<1x5x16x16xf32, #tpu.memory_space<vmem>>, %arg7: memref<1x1x8x16x16xf32, #tpu.memory_space<vmem>>, %arg8: memref<1x1x2x128xf32, #tpu.memory_space<vmem>>, %arg9: memref<8x16x16xf32, #tpu.memory_space<vmem>>, %arg10: memref<8x16x16xf32, #tpu.memory_space<vmem>>, %arg11: memref<5x16x16xf32, #tpu.memory_space<vmem>>) attributes {dimension_semantics = [#tpu.dimension_semantics<parallel>, #tpu.dimension_semantics<parallel>], iteration_bounds = array<i64: 2, 4>, scalar_prefetch = 0 : i64, scratch_operands = 3 : i64, tpu.core_type = #tpu.core_type<tc>, window_params = [{transform_indices = @transform_0, window_bounds = array<i64: 1, 1, 8, 16, 16>}, {transform_indices = @transform_1, window_bounds = array<i64: 1, 5, 16, 16>}, {transform_indices = @transform_2, window_bounds = array<i64: 1, 5, 16, 16>}, {transform_indices = @transform_3, window_bounds = array<i64: 1, 5, 16, 16>}, {transform_indices = @transform_4, window_bounds = array<i64: 1, 5, 16, 16>}, {transform_indices = @transform_5, window_bounds = array<i64: 1, 1, 8, 16, 16>}, {transform_indices = @transform_6, window_bounds = array<i64: 1, 1, 2, 128>}]} {
    %c0_i32 = arith.constant 0 : i32
    %c8_i32 = arith.constant 8 : i32
    %0 = arith.addi %c0_i32, %c8_i32 : i32
    %c1_i32 = arith.constant 1 : i32
    scf.for %arg12 = %c0_i32 to %0 step %c1_i32  : i32 {
      %c0_100 = arith.constant 0 : index
      %c0_101 = arith.constant 0 : index
      %90 = arith.index_cast %arg12 : i32 to index
      %c0_102 = arith.constant 0 : index
      %c0_103 = arith.constant 0 : index
      %91 = vector.load %arg2[%c0_100, %c0_101, %90, %c0_102, %c0_103] : memref<1x1x8x16x16xf32, #tpu.memory_space<vmem>>, vector<1x1x1x16x16xf32>
      %92 = vector.shape_cast %91 : vector<1x1x1x16x16xf32> to vector<16x16xf32>
      %93 = tpu.transpose %92, [1, 0] : vector<16x16xf32> -> vector<16x16xf32>
      %94 = arith.index_cast %arg12 : i32 to index
      %c0_104 = arith.constant 0 : index
      %c0_105 = arith.constant 0 : index
      %95 = vector.load %arg9[%94, %c0_104, %c0_105] : memref<8x16x16xf32, #tpu.memory_space<vmem>>, vector<1x16x16xf32>
      %96 = vector.shape_cast %95 : vector<1x16x16xf32> to vector<16x16xf32>
      %97 = vector.shape_cast %93 : vector<16x16xf32> to vector<1x16x16xf32>
      tpu.vector_store %arg9[%94, %c0_104, %c0_105], %97 {strides = array<i32>} : memref<8x16x16xf32, #tpu.memory_space<vmem>>, vector<1x16x16xf32>,
    }
    %c8_i32_0 = arith.constant 8 : i32
    %c0 = arith.constant 0 : index
    %c0_1 = arith.constant 0 : index
    %c0_2 = arith.constant 0 : index
    %c0_3 = arith.constant 0 : index
    %1 = vector.load %arg3[%c0, %c0_1, %c0_2, %c0_3] : memref<1x5x16x16xf32, #tpu.memory_space<vmem>>, vector<1x1x16x16xf32>
    %2 = vector.shape_cast %1 : vector<1x1x16x16xf32> to vector<16x16xf32>
    %3 = tpu.transpose %2, [1, 0] : vector<16x16xf32> -> vector<16x16xf32>
    %c0_4 = arith.constant 0 : index
    %c0_5 = arith.constant 0 : index
    %c0_6 = arith.constant 0 : index
    %4 = vector.load %arg11[%c0_4, %c0_5, %c0_6] : memref<5x16x16xf32, #tpu.memory_space<vmem>>, vector<1x16x16xf32>
    %5 = vector.shape_cast %4 : vector<1x16x16xf32> to vector<16x16xf32>
    %6 = vector.shape_cast %3 : vector<16x16xf32> to vector<1x16x16xf32>
    tpu.vector_store %arg11[%c0_4, %c0_5, %c0_6], %6 {strides = array<i32>} : memref<5x16x16xf32, #tpu.memory_space<vmem>>, vector<1x16x16xf32>,
    %c0_7 = arith.constant 0 : index
    %c1 = arith.constant 1 : index
    %c0_8 = arith.constant 0 : index
    %c0_9 = arith.constant 0 : index
    %7 = vector.load %arg3[%c0_7, %c1, %c0_8, %c0_9] : memref<1x5x16x16xf32, #tpu.memory_space<vmem>>, vector<1x1x16x16xf32>
    %8 = vector.shape_cast %7 : vector<1x1x16x16xf32> to vector<16x16xf32>
    %9 = tpu.transpose %8, [1, 0] : vector<16x16xf32> -> vector<16x16xf32>
    %c1_10 = arith.constant 1 : index
    %c0_11 = arith.constant 0 : index
    %c0_12 = arith.constant 0 : index
    %10 = vector.load %arg11[%c1_10, %c0_11, %c0_12] : memref<5x16x16xf32, #tpu.memory_space<vmem>>, vector<1x16x16xf32>
    %11 = vector.shape_cast %10 : vector<1x16x16xf32> to vector<16x16xf32>
    %12 = vector.shape_cast %9 : vector<16x16xf32> to vector<1x16x16xf32>
    tpu.vector_store %arg11[%c1_10, %c0_11, %c0_12], %12 {strides = array<i32>} : memref<5x16x16xf32, #tpu.memory_space<vmem>>, vector<1x16x16xf32>,
    %c0_13 = arith.constant 0 : index
    %c2 = arith.constant 2 : index
    %c0_14 = arith.constant 0 : index
    %c0_15 = arith.constant 0 : index
    %13 = vector.load %arg3[%c0_13, %c2, %c0_14, %c0_15] : memref<1x5x16x16xf32, #tpu.memory_space<vmem>>, vector<1x1x16x16xf32>
    %14 = vector.shape_cast %13 : vector<1x1x16x16xf32> to vector<16x16xf32>
    %15 = tpu.transpose %14, [1, 0] : vector<16x16xf32> -> vector<16x16xf32>
    %c2_16 = arith.constant 2 : index
    %c0_17 = arith.constant 0 : index
    %c0_18 = arith.constant 0 : index
    %16 = vector.load %arg11[%c2_16, %c0_17, %c0_18] : memref<5x16x16xf32, #tpu.memory_space<vmem>>, vector<1x16x16xf32>
    %17 = vector.shape_cast %16 : vector<1x16x16xf32> to vector<16x16xf32>
    %18 = vector.shape_cast %15 : vector<16x16xf32> to vector<1x16x16xf32>
    tpu.vector_store %arg11[%c2_16, %c0_17, %c0_18], %18 {strides = array<i32>} : memref<5x16x16xf32, #tpu.memory_space<vmem>>, vector<1x16x16xf32>,
    %c0_19 = arith.constant 0 : index
    %c3 = arith.constant 3 : index
    %c0_20 = arith.constant 0 : index
    %c0_21 = arith.constant 0 : index
    %19 = vector.load %arg3[%c0_19, %c3, %c0_20, %c0_21] : memref<1x5x16x16xf32, #tpu.memory_space<vmem>>, vector<1x1x16x16xf32>
    %20 = vector.shape_cast %19 : vector<1x1x16x16xf32> to vector<16x16xf32>
    %21 = tpu.transpose %20, [1, 0] : vector<16x16xf32> -> vector<16x16xf32>
    %c3_22 = arith.constant 3 : index
    %c0_23 = arith.constant 0 : index
    %c0_24 = arith.constant 0 : index
    %22 = vector.load %arg11[%c3_22, %c0_23, %c0_24] : memref<5x16x16xf32, #tpu.memory_space<vmem>>, vector<1x16x16xf32>
    %23 = vector.shape_cast %22 : vector<1x16x16xf32> to vector<16x16xf32>
    %24 = vector.shape_cast %21 : vector<16x16xf32> to vector<1x16x16xf32>
    tpu.vector_store %arg11[%c3_22, %c0_23, %c0_24], %24 {strides = array<i32>} : memref<5x16x16xf32, #tpu.memory_space<vmem>>, vector<1x16x16xf32>,
    %c0_25 = arith.constant 0 : index
    %c4 = arith.constant 4 : index
    %c0_26 = arith.constant 0 : index
    %c0_27 = arith.constant 0 : index
    %25 = vector.load %arg3[%c0_25, %c4, %c0_26, %c0_27] : memref<1x5x16x16xf32, #tpu.memory_space<vmem>>, vector<1x1x16x16xf32>
    %26 = vector.shape_cast %25 : vector<1x1x16x16xf32> to vector<16x16xf32>
    %27 = tpu.transpose %26, [1, 0] : vector<16x16xf32> -> vector<16x16xf32>
    %c4_28 = arith.constant 4 : index
    %c0_29 = arith.constant 0 : index
    %c0_30 = arith.constant 0 : index
    %28 = vector.load %arg11[%c4_28, %c0_29, %c0_30] : memref<5x16x16xf32, #tpu.memory_space<vmem>>, vector<1x16x16xf32>
    %29 = vector.shape_cast %28 : vector<1x16x16xf32> to vector<16x16xf32>
    %30 = vector.shape_cast %27 : vector<16x16xf32> to vector<1x16x16xf32>
    tpu.vector_store %arg11[%c4_28, %c0_29, %c0_30], %30 {strides = array<i32>} : memref<5x16x16xf32, #tpu.memory_space<vmem>>, vector<1x16x16xf32>,
    %cst = arith.constant 0.000000e+00 : f32
    %31 = vector.broadcast %cst : f32 to vector<8x1x16xf32>
    %c0_i32_31 = arith.constant 0 : i32
    %c16_i32 = arith.constant 16 : i32
    %32 = arith.addi %c0_i32_31, %c16_i32 : i32
    %c1_i32_32 = arith.constant 1 : i32
    %33 = scf.for %arg12 = %c0_i32_31 to %32 step %c1_i32_32 iter_args(%arg13 = %31) -> (vector<8x1x16xf32>)  : i32 {
      %c0_100 = arith.constant 0 : index
      %90 = arith.index_cast %arg12 : i32 to index
      %c0_101 = arith.constant 0 : index
      %91 = vector.load %arg9[%c0_100, %90, %c0_101] : memref<8x16x16xf32, #tpu.memory_space<vmem>>, vector<8x1x16xf32>
      %c0_102 = arith.constant 0 : index
      %92 = arith.index_cast %arg12 : i32 to index
      %c0_103 = arith.constant 0 : index
      %93 = vector.load %arg11[%c0_102, %92, %c0_103] : memref<5x16x16xf32, #tpu.memory_space<vmem>>, vector<5x1x16xf32>
      %94 = math.absf %93 : vector<5x1x16xf32>
      %cst_104 = arith.constant dense<0.000000e+00> : vector<1x16xf32>
      %95 = vector.multi_reduction <add>, %94, %cst_104 [0] : vector<5x1x16xf32> to vector<1x16xf32>
      %96 = vector.shape_cast %95 : vector<1x16xf32> to vector<1x1x16xf32>
      %cst_105 = arith.constant 9.99999996E-13 : f32
      %97 = vector.broadcast %cst_105 : f32 to vector<1x1x16xf32>
      %98 = arith.maximumf %96, %97 : vector<1x1x16xf32>
      %99 = vector.broadcast %98 : vector<1x1x16xf32> to vector<5x1x16xf32>
      %100 = arith.divf %93, %99 : vector<5x1x16xf32>
      %cst_106 = arith.constant 0.000000e+00 : f32
      %101 = vector.broadcast %cst_106 : f32 to vector<1x1x16xf32>
      %102 = vector.extract_strided_slice %arg13 {offsets = [0, 0, 0], sizes = [7, 1, 16], strides = [1, 1, 1]} : vector<8x1x16xf32> to vector<7x1x16xf32>
      %103 = tpu.concatenate %101, %102 in 0 : vector<1x1x16xf32>, vector<7x1x16xf32> -> vector<8x1x16xf32>
      %104 = vector.extract_strided_slice %arg13 {offsets = [1, 0, 0], sizes = [7, 1, 16], strides = [1, 1, 1]} : vector<8x1x16xf32> to vector<7x1x16xf32>
      %105 = tpu.concatenate %104, %101 in 0 : vector<7x1x16xf32>, vector<1x1x16xf32> -> vector<8x1x16xf32>
      %cst_107 = arith.constant dense<0xFF800000> : vector<1x16xf32>
      %106 = vector.multi_reduction <maximumf>, %arg13, %cst_107 [0] : vector<8x1x16xf32> to vector<1x16xf32>
      %107 = vector.shape_cast %106 : vector<1x16xf32> to vector<1x1x16xf32>
      %108 = vector.extract_strided_slice %100 {offsets = [0, 0, 0], sizes = [1, 1, 16], strides = [1, 1, 1]} : vector<5x1x16xf32> to vector<1x1x16xf32>
      %109 = vector.broadcast %108 : vector<1x1x16xf32> to vector<8x1x16xf32>
      %110 = arith.mulf %109, %91 : vector<8x1x16xf32>
      %111 = vector.extract_strided_slice %100 {offsets = [1, 0, 0], sizes = [1, 1, 16], strides = [1, 1, 1]} : vector<5x1x16xf32> to vector<1x1x16xf32>
      %112 = vector.broadcast %111 : vector<1x1x16xf32> to vector<8x1x16xf32>
      %113 = arith.mulf %112, %arg13 : vector<8x1x16xf32>
      %114 = arith.addf %110, %113 : vector<8x1x16xf32>
      %115 = vector.extract_strided_slice %100 {offsets = [2, 0, 0], sizes = [1, 1, 16], strides = [1, 1, 1]} : vector<5x1x16xf32> to vector<1x1x16xf32>
      %116 = vector.broadcast %115 : vector<1x1x16xf32> to vector<8x1x16xf32>
      %117 = arith.mulf %116, %103 : vector<8x1x16xf32>
      %118 = arith.addf %114, %117 : vector<8x1x16xf32>
      %119 = vector.extract_strided_slice %100 {offsets = [3, 0, 0], sizes = [1, 1, 16], strides = [1, 1, 1]} : vector<5x1x16xf32> to vector<1x1x16xf32>
      %120 = vector.broadcast %119 : vector<1x1x16xf32> to vector<8x1x16xf32>
      %121 = arith.mulf %120, %105 : vector<8x1x16xf32>
      %122 = arith.addf %118, %121 : vector<8x1x16xf32>
      %123 = vector.extract_strided_slice %100 {offsets = [4, 0, 0], sizes = [1, 1, 16], strides = [1, 1, 1]} : vector<5x1x16xf32> to vector<1x1x16xf32>
      %124 = arith.mulf %123, %107 : vector<1x1x16xf32>
      %125 = vector.broadcast %124 : vector<1x1x16xf32> to vector<8x1x16xf32>
      %126 = arith.addf %122, %125 : vector<8x1x16xf32>
      %c0_108 = arith.constant 0 : index
      %127 = arith.index_cast %arg12 : i32 to index
      %c0_109 = arith.constant 0 : index
      %128 = vector.load %arg10[%c0_108, %127, %c0_109] : memref<8x16x16xf32, #tpu.memory_space<vmem>>, vector<8x1x16xf32>
      tpu.vector_store %arg10[%c0_108, %127, %c0_109], %126 {strides = array<i32>} : memref<8x16x16xf32, #tpu.memory_space<vmem>>, vector<8x1x16xf32>,
      scf.yield %126 : vector<8x1x16xf32>
    }
    %c16_i32_33 = arith.constant 16 : i32
    %c0_34 = arith.constant 0 : index
    %c0_35 = arith.constant 0 : index
    %c0_36 = arith.constant 0 : index
    %c0_37 = arith.constant 0 : index
    %34 = vector.load %arg4[%c0_34, %c0_35, %c0_36, %c0_37] : memref<1x5x16x16xf32, #tpu.memory_space<vmem>>, vector<1x1x16x16xf32>
    %35 = vector.shape_cast %34 : vector<1x1x16x16xf32> to vector<16x16xf32>
    %36 = tpu.transpose %35, [1, 0] : vector<16x16xf32> -> vector<16x16xf32>
    %c0_38 = arith.constant 0 : index
    %c0_39 = arith.constant 0 : index
    %c0_40 = arith.constant 0 : index
    %37 = vector.load %arg11[%c0_38, %c0_39, %c0_40] : memref<5x16x16xf32, #tpu.memory_space<vmem>>, vector<1x16x16xf32>
    %38 = vector.shape_cast %37 : vector<1x16x16xf32> to vector<16x16xf32>
    %39 = vector.shape_cast %36 : vector<16x16xf32> to vector<1x16x16xf32>
    tpu.vector_store %arg11[%c0_38, %c0_39, %c0_40], %39 {strides = array<i32>} : memref<5x16x16xf32, #tpu.memory_space<vmem>>, vector<1x16x16xf32>,
    %c0_41 = arith.constant 0 : index
    %c1_42 = arith.constant 1 : index
    %c0_43 = arith.constant 0 : index
    %c0_44 = arith.constant 0 : index
    %40 = vector.load %arg4[%c0_41, %c1_42, %c0_43, %c0_44] : memref<1x5x16x16xf32, #tpu.memory_space<vmem>>, vector<1x1x16x16xf32>
    %41 = vector.shape_cast %40 : vector<1x1x16x16xf32> to vector<16x16xf32>
    %42 = tpu.transpose %41, [1, 0] : vector<16x16xf32> -> vector<16x16xf32>
    %c1_45 = arith.constant 1 : index
    %c0_46 = arith.constant 0 : index
    %c0_47 = arith.constant 0 : index
    %43 = vector.load %arg11[%c1_45, %c0_46, %c0_47] : memref<5x16x16xf32, #tpu.memory_space<vmem>>, vector<1x16x16xf32>
    %44 = vector.shape_cast %43 : vector<1x16x16xf32> to vector<16x16xf32>
    %45 = vector.shape_cast %42 : vector<16x16xf32> to vector<1x16x16xf32>
    tpu.vector_store %arg11[%c1_45, %c0_46, %c0_47], %45 {strides = array<i32>} : memref<5x16x16xf32, #tpu.memory_space<vmem>>, vector<1x16x16xf32>,
    %c0_48 = arith.constant 0 : index
    %c2_49 = arith.constant 2 : index
    %c0_50 = arith.constant 0 : index
    %c0_51 = arith.constant 0 : index
    %46 = vector.load %arg4[%c0_48, %c2_49, %c0_50, %c0_51] : memref<1x5x16x16xf32, #tpu.memory_space<vmem>>, vector<1x1x16x16xf32>
    %47 = vector.shape_cast %46 : vector<1x1x16x16xf32> to vector<16x16xf32>
    %48 = tpu.transpose %47, [1, 0] : vector<16x16xf32> -> vector<16x16xf32>
    %c2_52 = arith.constant 2 : index
    %c0_53 = arith.constant 0 : index
    %c0_54 = arith.constant 0 : index
    %49 = vector.load %arg11[%c2_52, %c0_53, %c0_54] : memref<5x16x16xf32, #tpu.memory_space<vmem>>, vector<1x16x16xf32>
    %50 = vector.shape_cast %49 : vector<1x16x16xf32> to vector<16x16xf32>
    %51 = vector.shape_cast %48 : vector<16x16xf32> to vector<1x16x16xf32>
    tpu.vector_store %arg11[%c2_52, %c0_53, %c0_54], %51 {strides = array<i32>} : memref<5x16x16xf32, #tpu.memory_space<vmem>>, vector<1x16x16xf32>,
    %c0_55 = arith.constant 0 : index
    %c3_56 = arith.constant 3 : index
    %c0_57 = arith.constant 0 : index
    %c0_58 = arith.constant 0 : index
    %52 = vector.load %arg4[%c0_55, %c3_56, %c0_57, %c0_58] : memref<1x5x16x16xf32, #tpu.memory_space<vmem>>, vector<1x1x16x16xf32>
    %53 = vector.shape_cast %52 : vector<1x1x16x16xf32> to vector<16x16xf32>
    %54 = tpu.transpose %53, [1, 0] : vector<16x16xf32> -> vector<16x16xf32>
    %c3_59 = arith.constant 3 : index
    %c0_60 = arith.constant 0 : index
    %c0_61 = arith.constant 0 : index
    %55 = vector.load %arg11[%c3_59, %c0_60, %c0_61] : memref<5x16x16xf32, #tpu.memory_space<vmem>>, vector<1x16x16xf32>
    %56 = vector.shape_cast %55 : vector<1x16x16xf32> to vector<16x16xf32>
    %57 = vector.shape_cast %54 : vector<16x16xf32> to vector<1x16x16xf32>
    tpu.vector_store %arg11[%c3_59, %c0_60, %c0_61], %57 {strides = array<i32>} : memref<5x16x16xf32, #tpu.memory_space<vmem>>, vector<1x16x16xf32>,
    %c0_62 = arith.constant 0 : index
    %c4_63 = arith.constant 4 : index
    %c0_64 = arith.constant 0 : index
    %c0_65 = arith.constant 0 : index
    %58 = vector.load %arg4[%c0_62, %c4_63, %c0_64, %c0_65] : memref<1x5x16x16xf32, #tpu.memory_space<vmem>>, vector<1x1x16x16xf32>
    %59 = vector.shape_cast %58 : vector<1x1x16x16xf32> to vector<16x16xf32>
    %60 = tpu.transpose %59, [1, 0] : vector<16x16xf32> -> vector<16x16xf32>
    %c4_66 = arith.constant 4 : index
    %c0_67 = arith.constant 0 : index
    %c0_68 = arith.constant 0 : index
    %61 = vector.load %arg11[%c4_66, %c0_67, %c0_68] : memref<5x16x16xf32, #tpu.memory_space<vmem>>, vector<1x16x16xf32>
    %62 = vector.shape_cast %61 : vector<1x16x16xf32> to vector<16x16xf32>
    %63 = vector.shape_cast %60 : vector<16x16xf32> to vector<1x16x16xf32>
    tpu.vector_store %arg11[%c4_66, %c0_67, %c0_68], %63 {strides = array<i32>} : memref<5x16x16xf32, #tpu.memory_space<vmem>>, vector<1x16x16xf32>,
    %cst_69 = arith.constant 0.000000e+00 : f32
    %64 = vector.broadcast %cst_69 : f32 to vector<8x1x16xf32>
    %c0_i32_70 = arith.constant 0 : i32
    %c16_i32_71 = arith.constant 16 : i32
    %65 = arith.addi %c0_i32_70, %c16_i32_71 : i32
    %c1_i32_72 = arith.constant 1 : i32
    %66 = scf.for %arg12 = %c0_i32_70 to %65 step %c1_i32_72 iter_args(%arg13 = %64) -> (vector<8x1x16xf32>)  : i32 {
      %c15_i32 = arith.constant 15 : i32
      %90 = arith.subi %c15_i32, %arg12 : i32
      %c0_100 = arith.constant 0 : index
      %91 = arith.index_cast %90 : i32 to index
      %c0_101 = arith.constant 0 : index
      %92 = vector.load %arg9[%c0_100, %91, %c0_101] : memref<8x16x16xf32, #tpu.memory_space<vmem>>, vector<8x1x16xf32>
      %c0_102 = arith.constant 0 : index
      %93 = arith.index_cast %90 : i32 to index
      %c0_103 = arith.constant 0 : index
      %94 = vector.load %arg11[%c0_102, %93, %c0_103] : memref<5x16x16xf32, #tpu.memory_space<vmem>>, vector<5x1x16xf32>
      %95 = math.absf %94 : vector<5x1x16xf32>
      %cst_104 = arith.constant dense<0.000000e+00> : vector<1x16xf32>
      %96 = vector.multi_reduction <add>, %95, %cst_104 [0] : vector<5x1x16xf32> to vector<1x16xf32>
      %97 = vector.shape_cast %96 : vector<1x16xf32> to vector<1x1x16xf32>
      %cst_105 = arith.constant 9.99999996E-13 : f32
      %98 = vector.broadcast %cst_105 : f32 to vector<1x1x16xf32>
      %99 = arith.maximumf %97, %98 : vector<1x1x16xf32>
      %100 = vector.broadcast %99 : vector<1x1x16xf32> to vector<5x1x16xf32>
      %101 = arith.divf %94, %100 : vector<5x1x16xf32>
      %cst_106 = arith.constant 0.000000e+00 : f32
      %102 = vector.broadcast %cst_106 : f32 to vector<1x1x16xf32>
      %103 = vector.extract_strided_slice %arg13 {offsets = [0, 0, 0], sizes = [7, 1, 16], strides = [1, 1, 1]} : vector<8x1x16xf32> to vector<7x1x16xf32>
      %104 = tpu.concatenate %102, %103 in 0 : vector<1x1x16xf32>, vector<7x1x16xf32> -> vector<8x1x16xf32>
      %105 = vector.extract_strided_slice %arg13 {offsets = [1, 0, 0], sizes = [7, 1, 16], strides = [1, 1, 1]} : vector<8x1x16xf32> to vector<7x1x16xf32>
      %106 = tpu.concatenate %105, %102 in 0 : vector<7x1x16xf32>, vector<1x1x16xf32> -> vector<8x1x16xf32>
      %cst_107 = arith.constant dense<0xFF800000> : vector<1x16xf32>
      %107 = vector.multi_reduction <maximumf>, %arg13, %cst_107 [0] : vector<8x1x16xf32> to vector<1x16xf32>
      %108 = vector.shape_cast %107 : vector<1x16xf32> to vector<1x1x16xf32>
      %109 = vector.extract_strided_slice %101 {offsets = [0, 0, 0], sizes = [1, 1, 16], strides = [1, 1, 1]} : vector<5x1x16xf32> to vector<1x1x16xf32>
      %110 = vector.broadcast %109 : vector<1x1x16xf32> to vector<8x1x16xf32>
      %111 = arith.mulf %110, %92 : vector<8x1x16xf32>
      %112 = vector.extract_strided_slice %101 {offsets = [1, 0, 0], sizes = [1, 1, 16], strides = [1, 1, 1]} : vector<5x1x16xf32> to vector<1x1x16xf32>
      %113 = vector.broadcast %112 : vector<1x1x16xf32> to vector<8x1x16xf32>
      %114 = arith.mulf %113, %arg13 : vector<8x1x16xf32>
      %115 = arith.addf %111, %114 : vector<8x1x16xf32>
      %116 = vector.extract_strided_slice %101 {offsets = [2, 0, 0], sizes = [1, 1, 16], strides = [1, 1, 1]} : vector<5x1x16xf32> to vector<1x1x16xf32>
      %117 = vector.broadcast %116 : vector<1x1x16xf32> to vector<8x1x16xf32>
      %118 = arith.mulf %117, %104 : vector<8x1x16xf32>
      %119 = arith.addf %115, %118 : vector<8x1x16xf32>
      %120 = vector.extract_strided_slice %101 {offsets = [3, 0, 0], sizes = [1, 1, 16], strides = [1, 1, 1]} : vector<5x1x16xf32> to vector<1x1x16xf32>
      %121 = vector.broadcast %120 : vector<1x1x16xf32> to vector<8x1x16xf32>
      %122 = arith.mulf %121, %106 : vector<8x1x16xf32>
      %123 = arith.addf %119, %122 : vector<8x1x16xf32>
      %124 = vector.extract_strided_slice %101 {offsets = [4, 0, 0], sizes = [1, 1, 16], strides = [1, 1, 1]} : vector<5x1x16xf32> to vector<1x1x16xf32>
      %125 = arith.mulf %124, %108 : vector<1x1x16xf32>
      %126 = vector.broadcast %125 : vector<1x1x16xf32> to vector<8x1x16xf32>
      %127 = arith.addf %123, %126 : vector<8x1x16xf32>
      %c0_108 = arith.constant 0 : index
      %128 = arith.index_cast %90 : i32 to index
      %c0_109 = arith.constant 0 : index
      %129 = vector.load %arg10[%c0_108, %128, %c0_109] : memref<8x16x16xf32, #tpu.memory_space<vmem>>, vector<8x1x16xf32>
      %130 = arith.maximumf %129, %127 : vector<8x1x16xf32>
      %c0_110 = arith.constant 0 : index
      %131 = arith.index_cast %90 : i32 to index
      %c0_111 = arith.constant 0 : index
      %132 = vector.load %arg10[%c0_110, %131, %c0_111] : memref<8x16x16xf32, #tpu.memory_space<vmem>>, vector<8x1x16xf32>
      tpu.vector_store %arg10[%c0_110, %131, %c0_111], %130 {strides = array<i32>} : memref<8x16x16xf32, #tpu.memory_space<vmem>>, vector<8x1x16xf32>,
      scf.yield %127 : vector<8x1x16xf32>
    }
    %c16_i32_73 = arith.constant 16 : i32
    %c0_i32_74 = arith.constant 0 : i32
    %c8_i32_75 = arith.constant 8 : i32
    %67 = arith.addi %c0_i32_74, %c8_i32_75 : i32
    %c1_i32_76 = arith.constant 1 : i32
    scf.for %arg12 = %c0_i32_74 to %67 step %c1_i32_76  : i32 {
      %90 = arith.index_cast %arg12 : i32 to index
      %c0_100 = arith.constant 0 : index
      %c0_101 = arith.constant 0 : index
      %91 = vector.load %arg10[%90, %c0_100, %c0_101] : memref<8x16x16xf32, #tpu.memory_space<vmem>>, vector<1x16x16xf32>
      %92 = vector.shape_cast %91 : vector<1x16x16xf32> to vector<16x16xf32>
      %93 = tpu.transpose %92, [1, 0] : vector<16x16xf32> -> vector<16x16xf32>
      %c0_102 = arith.constant 0 : index
      %c0_103 = arith.constant 0 : index
      %94 = arith.index_cast %arg12 : i32 to index
      %c0_104 = arith.constant 0 : index
      %c0_105 = arith.constant 0 : index
      %95 = vector.load %arg7[%c0_102, %c0_103, %94, %c0_104, %c0_105] : memref<1x1x8x16x16xf32, #tpu.memory_space<vmem>>, vector<1x1x1x16x16xf32>
      %96 = vector.shape_cast %95 : vector<1x1x1x16x16xf32> to vector<16x16xf32>
      %97 = vector.shape_cast %93 : vector<16x16xf32> to vector<1x1x1x16x16xf32>
      tpu.vector_store %arg7[%c0_102, %c0_103, %94, %c0_104, %c0_105], %97 {strides = array<i32>} : memref<1x1x8x16x16xf32, #tpu.memory_space<vmem>>, vector<1x1x1x16x16xf32>,
    }
    %c8_i32_77 = arith.constant 8 : i32
    %cst_78 = arith.constant 0.000000e+00 : f32
    %68 = vector.broadcast %cst_78 : f32 to vector<8x1x16xf32>
    %c0_i32_79 = arith.constant 0 : i32
    %c16_i32_80 = arith.constant 16 : i32
    %69 = arith.addi %c0_i32_79, %c16_i32_80 : i32
    %c1_i32_81 = arith.constant 1 : i32
    %70 = scf.for %arg12 = %c0_i32_79 to %69 step %c1_i32_81 iter_args(%arg13 = %68) -> (vector<8x1x16xf32>)  : i32 {
      %c0_100 = arith.constant 0 : index
      %c0_101 = arith.constant 0 : index
      %c0_102 = arith.constant 0 : index
      %90 = arith.index_cast %arg12 : i32 to index
      %c0_103 = arith.constant 0 : index
      %91 = vector.load %arg2[%c0_100, %c0_101, %c0_102, %90, %c0_103] : memref<1x1x8x16x16xf32, #tpu.memory_space<vmem>>, vector<1x1x8x1x16xf32>
      %92 = vector.shape_cast %91 : vector<1x1x8x1x16xf32> to vector<8x1x16xf32>
      %c0_104 = arith.constant 0 : index
      %c0_105 = arith.constant 0 : index
      %93 = arith.index_cast %arg12 : i32 to index
      %c0_106 = arith.constant 0 : index
      %94 = vector.load %arg5[%c0_104, %c0_105, %93, %c0_106] : memref<1x5x16x16xf32, #tpu.memory_space<vmem>>, vector<1x5x1x16xf32>
      %95 = vector.shape_cast %94 : vector<1x5x1x16xf32> to vector<5x1x16xf32>
      %96 = math.absf %95 : vector<5x1x16xf32>
      %cst_107 = arith.constant dense<0.000000e+00> : vector<1x16xf32>
      %97 = vector.multi_reduction <add>, %96, %cst_107 [0] : vector<5x1x16xf32> to vector<1x16xf32>
      %98 = vector.shape_cast %97 : vector<1x16xf32> to vector<1x1x16xf32>
      %cst_108 = arith.constant 9.99999996E-13 : f32
      %99 = vector.broadcast %cst_108 : f32 to vector<1x1x16xf32>
      %100 = arith.maximumf %98, %99 : vector<1x1x16xf32>
      %101 = vector.broadcast %100 : vector<1x1x16xf32> to vector<5x1x16xf32>
      %102 = arith.divf %95, %101 : vector<5x1x16xf32>
      %cst_109 = arith.constant 0.000000e+00 : f32
      %103 = vector.broadcast %cst_109 : f32 to vector<1x1x16xf32>
      %104 = vector.extract_strided_slice %arg13 {offsets = [0, 0, 0], sizes = [7, 1, 16], strides = [1, 1, 1]} : vector<8x1x16xf32> to vector<7x1x16xf32>
      %105 = tpu.concatenate %103, %104 in 0 : vector<1x1x16xf32>, vector<7x1x16xf32> -> vector<8x1x16xf32>
      %106 = vector.extract_strided_slice %arg13 {offsets = [1, 0, 0], sizes = [7, 1, 16], strides = [1, 1, 1]} : vector<8x1x16xf32> to vector<7x1x16xf32>
      %107 = tpu.concatenate %106, %103 in 0 : vector<7x1x16xf32>, vector<1x1x16xf32> -> vector<8x1x16xf32>
      %cst_110 = arith.constant dense<0xFF800000> : vector<1x16xf32>
      %108 = vector.multi_reduction <maximumf>, %arg13, %cst_110 [0] : vector<8x1x16xf32> to vector<1x16xf32>
      %109 = vector.shape_cast %108 : vector<1x16xf32> to vector<1x1x16xf32>
      %110 = vector.extract_strided_slice %102 {offsets = [0, 0, 0], sizes = [1, 1, 16], strides = [1, 1, 1]} : vector<5x1x16xf32> to vector<1x1x16xf32>
      %111 = vector.broadcast %110 : vector<1x1x16xf32> to vector<8x1x16xf32>
      %112 = arith.mulf %111, %92 : vector<8x1x16xf32>
      %113 = vector.extract_strided_slice %102 {offsets = [1, 0, 0], sizes = [1, 1, 16], strides = [1, 1, 1]} : vector<5x1x16xf32> to vector<1x1x16xf32>
      %114 = vector.broadcast %113 : vector<1x1x16xf32> to vector<8x1x16xf32>
      %115 = arith.mulf %114, %arg13 : vector<8x1x16xf32>
      %116 = arith.addf %112, %115 : vector<8x1x16xf32>
      %117 = vector.extract_strided_slice %102 {offsets = [2, 0, 0], sizes = [1, 1, 16], strides = [1, 1, 1]} : vector<5x1x16xf32> to vector<1x1x16xf32>
      %118 = vector.broadcast %117 : vector<1x1x16xf32> to vector<8x1x16xf32>
      %119 = arith.mulf %118, %105 : vector<8x1x16xf32>
      %120 = arith.addf %116, %119 : vector<8x1x16xf32>
      %121 = vector.extract_strided_slice %102 {offsets = [3, 0, 0], sizes = [1, 1, 16], strides = [1, 1, 1]} : vector<5x1x16xf32> to vector<1x1x16xf32>
      %122 = vector.broadcast %121 : vector<1x1x16xf32> to vector<8x1x16xf32>
      %123 = arith.mulf %122, %107 : vector<8x1x16xf32>
      %124 = arith.addf %120, %123 : vector<8x1x16xf32>
      %125 = vector.extract_strided_slice %102 {offsets = [4, 0, 0], sizes = [1, 1, 16], strides = [1, 1, 1]} : vector<5x1x16xf32> to vector<1x1x16xf32>
      %126 = arith.mulf %125, %109 : vector<1x1x16xf32>
      %127 = vector.broadcast %126 : vector<1x1x16xf32> to vector<8x1x16xf32>
      %128 = arith.addf %124, %127 : vector<8x1x16xf32>
      %c0_111 = arith.constant 0 : index
      %c0_112 = arith.constant 0 : index
      %c0_113 = arith.constant 0 : index
      %129 = arith.index_cast %arg12 : i32 to index
      %c0_114 = arith.constant 0 : index
      %130 = vector.load %arg7[%c0_111, %c0_112, %c0_113, %129, %c0_114] : memref<1x1x8x16x16xf32, #tpu.memory_space<vmem>>, vector<1x1x8x1x16xf32>
      %131 = vector.shape_cast %130 : vector<1x1x8x1x16xf32> to vector<8x1x16xf32>
      %132 = arith.maximumf %131, %128 : vector<8x1x16xf32>
      %c0_115 = arith.constant 0 : index
      %c0_116 = arith.constant 0 : index
      %c0_117 = arith.constant 0 : index
      %133 = arith.index_cast %arg12 : i32 to index
      %c0_118 = arith.constant 0 : index
      %134 = vector.load %arg7[%c0_115, %c0_116, %c0_117, %133, %c0_118] : memref<1x1x8x16x16xf32, #tpu.memory_space<vmem>>, vector<1x1x8x1x16xf32>
      %135 = vector.shape_cast %134 : vector<1x1x8x1x16xf32> to vector<8x1x16xf32>
      %136 = vector.shape_cast %132 : vector<8x1x16xf32> to vector<1x1x8x1x16xf32>
      tpu.vector_store %arg7[%c0_115, %c0_116, %c0_117, %133, %c0_118], %136 {strides = array<i32>} : memref<1x1x8x16x16xf32, #tpu.memory_space<vmem>>, vector<1x1x8x1x16xf32>,
      scf.yield %128 : vector<8x1x16xf32>
    }
    %c16_i32_82 = arith.constant 16 : i32
    %cst_83 = arith.constant 0.000000e+00 : f32
    %71 = vector.broadcast %cst_83 : f32 to vector<8x1x16xf32>
    %cst_84 = arith.constant 0.000000e+00 : f32
    %72 = vector.broadcast %cst_84 : f32 to vector<1x16xf32>
    %cst_85 = arith.constant 0.000000e+00 : f32
    %73 = vector.broadcast %cst_85 : f32 to vector<1x16xf32>
    %c0_i32_86 = arith.constant 0 : i32
    %c16_i32_87 = arith.constant 16 : i32
    %74 = arith.addi %c0_i32_86, %c16_i32_87 : i32
    %c1_i32_88 = arith.constant 1 : i32
    %75:3 = scf.for %arg12 = %c0_i32_86 to %74 step %c1_i32_88 iter_args(%arg13 = %71, %arg14 = %72, %arg15 = %73) -> (vector<8x1x16xf32>, vector<1x16xf32>, vector<1x16xf32>)  : i32 {
      %c15_i32 = arith.constant 15 : i32
      %90 = arith.subi %c15_i32, %arg12 : i32
      %c0_100 = arith.constant 0 : index
      %c0_101 = arith.constant 0 : index
      %c0_102 = arith.constant 0 : index
      %91 = arith.index_cast %90 : i32 to index
      %c0_103 = arith.constant 0 : index
      %92 = vector.load %arg2[%c0_100, %c0_101, %c0_102, %91, %c0_103] : memref<1x1x8x16x16xf32, #tpu.memory_space<vmem>>, vector<1x1x8x1x16xf32>
      %93 = vector.shape_cast %92 : vector<1x1x8x1x16xf32> to vector<8x1x16xf32>
      %c0_104 = arith.constant 0 : index
      %c0_105 = arith.constant 0 : index
      %94 = arith.index_cast %90 : i32 to index
      %c0_106 = arith.constant 0 : index
      %95 = vector.load %arg6[%c0_104, %c0_105, %94, %c0_106] : memref<1x5x16x16xf32, #tpu.memory_space<vmem>>, vector<1x5x1x16xf32>
      %96 = vector.shape_cast %95 : vector<1x5x1x16xf32> to vector<5x1x16xf32>
      %97 = math.absf %96 : vector<5x1x16xf32>
      %cst_107 = arith.constant dense<0.000000e+00> : vector<1x16xf32>
      %98 = vector.multi_reduction <add>, %97, %cst_107 [0] : vector<5x1x16xf32> to vector<1x16xf32>
      %99 = vector.shape_cast %98 : vector<1x16xf32> to vector<1x1x16xf32>
      %cst_108 = arith.constant 9.99999996E-13 : f32
      %100 = vector.broadcast %cst_108 : f32 to vector<1x1x16xf32>
      %101 = arith.maximumf %99, %100 : vector<1x1x16xf32>
      %102 = vector.broadcast %101 : vector<1x1x16xf32> to vector<5x1x16xf32>
      %103 = arith.divf %96, %102 : vector<5x1x16xf32>
      %cst_109 = arith.constant 0.000000e+00 : f32
      %104 = vector.broadcast %cst_109 : f32 to vector<1x1x16xf32>
      %105 = vector.extract_strided_slice %arg13 {offsets = [0, 0, 0], sizes = [7, 1, 16], strides = [1, 1, 1]} : vector<8x1x16xf32> to vector<7x1x16xf32>
      %106 = tpu.concatenate %104, %105 in 0 : vector<1x1x16xf32>, vector<7x1x16xf32> -> vector<8x1x16xf32>
      %107 = vector.extract_strided_slice %arg13 {offsets = [1, 0, 0], sizes = [7, 1, 16], strides = [1, 1, 1]} : vector<8x1x16xf32> to vector<7x1x16xf32>
      %108 = tpu.concatenate %107, %104 in 0 : vector<7x1x16xf32>, vector<1x1x16xf32> -> vector<8x1x16xf32>
      %cst_110 = arith.constant dense<0xFF800000> : vector<1x16xf32>
      %109 = vector.multi_reduction <maximumf>, %arg13, %cst_110 [0] : vector<8x1x16xf32> to vector<1x16xf32>
      %110 = vector.shape_cast %109 : vector<1x16xf32> to vector<1x1x16xf32>
      %111 = vector.extract_strided_slice %103 {offsets = [0, 0, 0], sizes = [1, 1, 16], strides = [1, 1, 1]} : vector<5x1x16xf32> to vector<1x1x16xf32>
      %112 = vector.broadcast %111 : vector<1x1x16xf32> to vector<8x1x16xf32>
      %113 = arith.mulf %112, %93 : vector<8x1x16xf32>
      %114 = vector.extract_strided_slice %103 {offsets = [1, 0, 0], sizes = [1, 1, 16], strides = [1, 1, 1]} : vector<5x1x16xf32> to vector<1x1x16xf32>
      %115 = vector.broadcast %114 : vector<1x1x16xf32> to vector<8x1x16xf32>
      %116 = arith.mulf %115, %arg13 : vector<8x1x16xf32>
      %117 = arith.addf %113, %116 : vector<8x1x16xf32>
      %118 = vector.extract_strided_slice %103 {offsets = [2, 0, 0], sizes = [1, 1, 16], strides = [1, 1, 1]} : vector<5x1x16xf32> to vector<1x1x16xf32>
      %119 = vector.broadcast %118 : vector<1x1x16xf32> to vector<8x1x16xf32>
      %120 = arith.mulf %119, %106 : vector<8x1x16xf32>
      %121 = arith.addf %117, %120 : vector<8x1x16xf32>
      %122 = vector.extract_strided_slice %103 {offsets = [3, 0, 0], sizes = [1, 1, 16], strides = [1, 1, 1]} : vector<5x1x16xf32> to vector<1x1x16xf32>
      %123 = vector.broadcast %122 : vector<1x1x16xf32> to vector<8x1x16xf32>
      %124 = arith.mulf %123, %108 : vector<8x1x16xf32>
      %125 = arith.addf %121, %124 : vector<8x1x16xf32>
      %126 = vector.extract_strided_slice %103 {offsets = [4, 0, 0], sizes = [1, 1, 16], strides = [1, 1, 1]} : vector<5x1x16xf32> to vector<1x1x16xf32>
      %127 = arith.mulf %126, %110 : vector<1x1x16xf32>
      %128 = vector.broadcast %127 : vector<1x1x16xf32> to vector<8x1x16xf32>
      %129 = arith.addf %125, %128 : vector<8x1x16xf32>
      %c0_111 = arith.constant 0 : index
      %c0_112 = arith.constant 0 : index
      %c0_113 = arith.constant 0 : index
      %130 = arith.index_cast %90 : i32 to index
      %c0_114 = arith.constant 0 : index
      %131 = vector.load %arg7[%c0_111, %c0_112, %c0_113, %130, %c0_114] : memref<1x1x8x16x16xf32, #tpu.memory_space<vmem>>, vector<1x1x8x1x16xf32>
      %132 = vector.shape_cast %131 : vector<1x1x8x1x16xf32> to vector<8x1x16xf32>
      %133 = arith.maximumf %132, %129 : vector<8x1x16xf32>
      %c0_115 = arith.constant 0 : index
      %c0_116 = arith.constant 0 : index
      %c0_117 = arith.constant 0 : index
      %134 = arith.index_cast %90 : i32 to index
      %c0_118 = arith.constant 0 : index
      %135 = vector.load %arg7[%c0_115, %c0_116, %c0_117, %134, %c0_118] : memref<1x1x8x16x16xf32, #tpu.memory_space<vmem>>, vector<1x1x8x1x16xf32>
      %136 = vector.shape_cast %135 : vector<1x1x8x1x16xf32> to vector<8x1x16xf32>
      %137 = vector.shape_cast %133 : vector<8x1x16xf32> to vector<1x1x8x1x16xf32>
      tpu.vector_store %arg7[%c0_115, %c0_116, %c0_117, %134, %c0_118], %137 {strides = array<i32>} : memref<1x1x8x16x16xf32, #tpu.memory_space<vmem>>, vector<1x1x8x1x16xf32>,
      %cst_119 = arith.constant dense<0.000000e+00> : vector<1x16xf32>
      %138 = vector.multi_reduction <add>, %133, %cst_119 [0] : vector<8x1x16xf32> to vector<1x16xf32>
      %139 = arith.addf %arg14, %138 : vector<1x16xf32>
      %140 = arith.mulf %133, %133 : vector<8x1x16xf32>
      %cst_120 = arith.constant dense<0.000000e+00> : vector<1x16xf32>
      %141 = vector.multi_reduction <add>, %140, %cst_120 [0] : vector<8x1x16xf32> to vector<1x16xf32>
      %142 = arith.addf %arg15, %141 : vector<1x16xf32>
      scf.yield %129, %139, %142 : vector<8x1x16xf32>, vector<1x16xf32>, vector<1x16xf32>
    }
    %c16_i32_89 = arith.constant 16 : i32
    %cst_90 = arith.constant dense<0.000000e+00> : vector<1xf32>
    %76 = vector.multi_reduction <add>, %75#1, %cst_90 [1] : vector<1x16xf32> to vector<1xf32>
    %77 = vector.shape_cast %76 : vector<1xf32> to vector<1x1xf32>
    %cst_91 = arith.constant dense<0.000000e+00> : vector<1xf32>
    %78 = vector.multi_reduction <add>, %75#2, %cst_91 [1] : vector<1x16xf32> to vector<1xf32>
    %79 = vector.shape_cast %78 : vector<1xf32> to vector<1x1xf32>
    %80 = vector.shape_cast %77 : vector<1x1xf32> to vector<1x1xf32>
    %81 = vector.broadcast %80 : vector<1x1xf32> to vector<1x128xf32>
    %c0_92 = arith.constant 0 : index
    %c0_93 = arith.constant 0 : index
    %c0_94 = arith.constant 0 : index
    %c0_95 = arith.constant 0 : index
    %82 = vector.load %arg8[%c0_92, %c0_93, %c0_94, %c0_95] : memref<1x1x2x128xf32, #tpu.memory_space<vmem>>, vector<1x1x1x128xf32>
    %83 = vector.shape_cast %82 : vector<1x1x1x128xf32> to vector<1x128xf32>
    %84 = vector.shape_cast %81 : vector<1x128xf32> to vector<1x1x1x128xf32>
    tpu.vector_store %arg8[%c0_92, %c0_93, %c0_94, %c0_95], %84 {strides = array<i32>} : memref<1x1x2x128xf32, #tpu.memory_space<vmem>>, vector<1x1x1x128xf32>,
    %85 = vector.shape_cast %79 : vector<1x1xf32> to vector<1x1xf32>
    %86 = vector.broadcast %85 : vector<1x1xf32> to vector<1x128xf32>
    %c0_96 = arith.constant 0 : index
    %c0_97 = arith.constant 0 : index
    %c1_98 = arith.constant 1 : index
    %c0_99 = arith.constant 0 : index
    %87 = vector.load %arg8[%c0_96, %c0_97, %c1_98, %c0_99] : memref<1x1x2x128xf32, #tpu.memory_space<vmem>>, vector<1x1x1x128xf32>
    %88 = vector.shape_cast %87 : vector<1x1x1x128xf32> to vector<1x128xf32>
    %89 = vector.shape_cast %86 : vector<1x128xf32> to vector<1x1x1x128xf32>
    tpu.vector_store %arg8[%c0_96, %c0_97, %c1_98, %c0_99], %89 {strides = array<i32>} : memref<1x1x2x128xf32, #tpu.memory_space<vmem>>, vector<1x1x1x128xf32>,
    return
  }
  func.func @transform_0(%arg0: i32, %arg1: i32) -> (i32, i32, i32, i32, i32) {
    %c0_i32 = arith.constant 0 : i32
    %c0_i32_0 = arith.constant 0 : i32
    %c0_i32_1 = arith.constant 0 : i32
    %c0_i32_2 = arith.constant 0 : i32
    return %arg0, %arg1, %c0_i32, %c0_i32_0, %c0_i32_1 : i32, i32, i32, i32, i32
  }
  func.func @transform_1(%arg0: i32, %arg1: i32) -> (i32, i32, i32, i32) {
    %c0_i32 = arith.constant 0 : i32
    %0 = arith.addi %c0_i32, %arg1 : i32
    %c0_i32_0 = arith.constant 0 : i32
    %c0_i32_1 = arith.constant 0 : i32
    %c0_i32_2 = arith.constant 0 : i32
    return %arg0, %0, %c0_i32_0, %c0_i32_1 : i32, i32, i32, i32
  }
  func.func @transform_2(%arg0: i32, %arg1: i32) -> (i32, i32, i32, i32) {
    %c4_i32 = arith.constant 4 : i32
    %0 = arith.addi %c4_i32, %arg1 : i32
    %c0_i32 = arith.constant 0 : i32
    %c0_i32_0 = arith.constant 0 : i32
    %c0_i32_1 = arith.constant 0 : i32
    return %arg0, %0, %c0_i32, %c0_i32_0 : i32, i32, i32, i32
  }
  func.func @transform_3(%arg0: i32, %arg1: i32) -> (i32, i32, i32, i32) {
    %c8_i32 = arith.constant 8 : i32
    %0 = arith.addi %c8_i32, %arg1 : i32
    %c0_i32 = arith.constant 0 : i32
    %c0_i32_0 = arith.constant 0 : i32
    %c0_i32_1 = arith.constant 0 : i32
    return %arg0, %0, %c0_i32, %c0_i32_0 : i32, i32, i32, i32
  }
  func.func @transform_4(%arg0: i32, %arg1: i32) -> (i32, i32, i32, i32) {
    %c12_i32 = arith.constant 12 : i32
    %0 = arith.addi %c12_i32, %arg1 : i32
    %c0_i32 = arith.constant 0 : i32
    %c0_i32_0 = arith.constant 0 : i32
    %c0_i32_1 = arith.constant 0 : i32
    return %arg0, %0, %c0_i32, %c0_i32_0 : i32, i32, i32, i32
  }
  func.func @transform_5(%arg0: i32, %arg1: i32) -> (i32, i32, i32, i32, i32) {
    %c0_i32 = arith.constant 0 : i32
    %c0_i32_0 = arith.constant 0 : i32
    %c0_i32_1 = arith.constant 0 : i32
    %c0_i32_2 = arith.constant 0 : i32
    return %arg0, %arg1, %c0_i32, %c0_i32_0, %c0_i32_1 : i32, i32, i32, i32, i32
  }
  func.func @transform_6(%arg0: i32, %arg1: i32) -> (i32, i32, i32, i32) {
    %c0_i32 = arith.constant 0 : i32
    %c0_i32_0 = arith.constant 0 : i32
    %c0_i32_1 = arith.constant 0 : i32
    return %arg0, %arg1, %c0_i32, %c0_i32_0 : i32, i32, i32, i32
  }
}

</mosaic_0001>

<llo_original>
// kernel: tpu_custom_call.1
$region0: #{tpu_custom_call.1}
  #allocation0 [shape = 'u32[]', space=smem, size = 0x4, offset = 0x4, fixed_abs, tag = 'smem constant byte address 0x4 - core index']
  #allocation1 [shape = 'u32[144,128]{1,0:T(1,128)}', space=vmem, size = 0x12000, scoped, tag = 'internal scratch']
  #allocation2 [shape = 'f32[8,16,16]{2,1,0:T(8,128)}', space=vmem, size = 0x10000, scoped, tag = 'scratch operand']
  #allocation3 [shape = 'f32[8,16,16]{2,1,0:T(8,128)}', space=vmem, size = 0x10000, scoped, tag = 'scratch operand']
  #allocation4 [shape = 'f32[5,16,16]{2,1,0:T(8,128)}', space=vmem, size = 0xa000, scoped, tag = 'scratch operand']
  %s0 = inlined_call_operand.hbm [shape: f32[2,4,8,16,16], index: 0, kind: input, shape index: {}]
  %s1 = inlined_call_operand.hbm [shape: f32[2,80,16,16], index: 1, kind: input, shape index: {}]
  %s2 = inlined_call_operand.hbm [shape: f32[2,80,16,16], index: 2, kind: input, shape index: {}]
  %s3 = inlined_call_operand.hbm [shape: f32[2,80,16,16], index: 3, kind: input, shape index: {}]
  %s4 = inlined_call_operand.hbm [shape: f32[2,80,16,16], index: 4, kind: input, shape index: {}]
  %s5 = inlined_call_operand.hbm [shape: f32[2,4,8,16,16], index: 5, kind: output, shape index: {0}]
  %s6 = inlined_call_operand.hbm [shape: f32[2,4,2,128], index: 6, kind: output, shape index: {1}]
  %7 = xla_tuple %s5, %s6
  %s8 = sld [smem:[#allocation0]]
  $region123: #{tpu_custom_call.1} parent=0
    _
  %s10 = ssub.s32 1, %s8
  %s11 = scalar_select 0, %s10, %s8
  $region1: #{tpu_custom_call.1} parent=0
    #allocation5 [shape = 'u8[131072]{0}', space=vmem, size = 0x20000, scoped, tag = 'input window, operand 0']
    #allocation6 [shape = 's32[2]{0}', space=sflag, size = 0x8, scoped, tag = 'scoped memory for tpu_custom_call.1']
    #allocation7 [shape = 's32[2]{0}', space=sflag, size = 0x8, scoped, tag = 'scoped memory for tpu_custom_call.1']
    #allocation8 [shape = 'u8[81920]{0}', space=vmem, size = 0x14000, scoped, tag = 'input window, operand 1']
    #allocation9 [shape = 's32[2]{0}', space=sflag, size = 0x8, scoped, tag = 'scoped memory for tpu_custom_call.1']
    #allocation10 [shape = 'u8[81920]{0}', space=vmem, size = 0x14000, scoped, tag = 'input window, operand 2']
    #allocation11 [shape = 'u8[81920]{0}', space=vmem, size = 0x14000, scoped, tag = 'input window, operand 3']
    #allocation12 [shape = 's32[2]{0}', space=sflag, size = 0x8, scoped, tag = 'scoped memory for tpu_custom_call.1']
    #allocation13 [shape = 'u8[81920]{0}', space=vmem, size = 0x14000, scoped, tag = 'input window, operand 4']
    #allocation14 [shape = 'u8[131072]{0}', space=vmem, size = 0x20000, scoped, tag = 'output window, operand 0']
    #allocation15 [shape = 'u8[2048]{0}', space=vmem, size = 0x800, scoped, tag = 'output window, operand 1']
    #allocation16 [shape = 's32[2]{0}', space=sflag, size = 0x8, scoped, tag = 'scoped memory for tpu_custom_call.1']
    %12 = vsyncpa [#allocation6], 0
    %s13 = scalar_lea.sflag [#allocation6], 1
    %14 = vsyncpa %s13, 0
    %15 = vsyncpa [#allocation9], 0
    %s16 = scalar_lea.sflag [#allocation9], 1
    %17 = vsyncpa %s16, 0
    %18 = vsyncpa [#allocation12], 0
    %s19 = scalar_lea.sflag [#allocation12], 1
    %20 = vsyncpa %s19, 0
    %21 = vsyncpa [#allocation7], 0
    %s22 = scalar_lea.sflag [#allocation7], 1
    %23 = vsyncpa %s22, 0
    %24 = vsyncpa [#allocation16], 0
    %s25 = scalar_lea.sflag [#allocation16], 1
    %26 = vsyncpa %s25, 0
    loop: start=0, step=1, limit=10
    $region2: #{tpu_custom_call.1} parent=1 // loop_pre_header
      _
    $region3: #{tpu_custom_call.1} parent=1 // loop_header
      %s28 = sphi 0, %s32
      %p29 = scmp.ge.s32.totalorder %s28, 10
      %s35 = sphi 0, %s47
      %s36 = sphi 0, %s43
      %s37 = sphi 0, %s35
      %s38 = sphi 0, %s36
      %s39 = sphi 0, %s37
      %s40 = sphi 0, %s38
      %s52 = sphi 0, %s54
      %s55 = sphi 0, %s52
      %s56 = sphi 0, %s55
      %s72 = sphi 0, %s56
      %s80 = sphi 0, %s82
      %s83 = sphi 0, %s80
      %s84 = sphi 0, %s83
      %s100 = sphi 0, %s84
      %s110 = sphi 0, %s112
      %s113 = sphi 0, %s110
      %s114 = sphi 0, %s113
      %s130 = sphi 0, %s114
      %s140 = sphi 0, %s142
      %s143 = sphi 0, %s140
      %s144 = sphi 0, %s143
      %s160 = sphi 0, %s144
      %s170 = sphi 0, %s172
      %s173 = sphi 0, %s170
      %s174 = sphi 0, %s173
      %s190 = sphi 0, %s174
      %s198 = sphi 0, %s200
      %s201 = sphi 0, %s198
      %s202 = sphi 0, %s201
      %s218 = sphi 0, %s202
      %s226 = sphi 0, %s228
      %s229 = sphi 0, %s226
      %s230 = sphi 0, %s229
      %s246 = sphi 0, %s230
    $region4: #{tpu_custom_call.1} parent=1 // loop_header_branch
      %31 = sbr.rel (%p29) target = $region8
    $region5: #{tpu_custom_call.1} parent=1 // loop_body
      %s33 = ssub.s32 %s28, 1
      %s34 = ssub.s32 %s28, 2
      %s41 = sadd.s32 1, %s36
      %p42 = scmp.ge.s32.totalorder %s41, 4
      %s43 = scalar_select %p42, 0, %s41
      %s44 = sadd.s32 1, %s35
      %s45 = scalar_select %p42, %s44, %s35
      %p46 = scmp.ge.s32.totalorder %s45, 2
      %s47 = scalar_select %p46, 0, %s45
      %s48 = ssub.s32 %s35, %s47
      %s49 = ssub.s32 %s36, %s43
      %s50 = sor.u32 %s48, %s49
      %p51 = scmp.eq.s32.totalorder %s50, 0
      %s53 = sadd.s32 %s52, 1
      %s54 = scalar_select %p51, %s52, %s53
      %p57 = pneg %p51
      %p58 = scmp.eq.s32.totalorder %s28, 7
      %p59 = por %p57, %p58
      %p60 = scmp.ne.s32.totalorder %s52, %s55
      %p61 = scmp.eq.s32.totalorder %s28, 0
      %p62 = por %p60, %p61
      %p63 = scmp.ne.s32.totalorder %s52, %s55
      %p64 = scmp.eq.s32.totalorder %s33, 7
      %p65 = por %p63, %p64
      %p66 = scmp.ne.s32.totalorder %s55, %s56
      %p67 = scmp.eq.s32.totalorder %s33, 0
      %p68 = por %p66, %p67
      %p69 = scmp.ne.s32.totalorder %s55, %s56
      %p70 = scmp.eq.s32.totalorder %s34, 7
      %p71 = por %p69, %p70
      %p73 = scmp.ne.s32.totalorder %s56, %s72
      %p74 = scmp.eq.s32.totalorder %s34, 0
      %p75 = por %p73, %p74
      %s76 = ssub.s32 %s35, %s47
      %s77 = ssub.s32 %s36, %s43
      %s78 = sor.u32 %s76, %s77
      %p79 = scmp.eq.s32.totalorder %s78, 0
      %s81 = sadd.s32 %s80, 1
      %s82 = scalar_select %p79, %s80, %s81
      %p85 = pneg %p79
      %p86 = scmp.eq.s32.totalorder %s28, 7
      %p87 = por %p85, %p86
      %p88 = scmp.ne.s32.totalorder %s80, %s83
      %p89 = scmp.eq.s32.totalorder %s28, 0
      %p90 = por %p88, %p89
      %p91 = scmp.ne.s32.totalorder %s80, %s83
      %p92 = scmp.eq.s32.totalorder %s33, 7
      %p93 = por %p91, %p92
      %p94 = scmp.ne.s32.totalorder %s83, %s84
      %p95 = scmp.eq.s32.totalorder %s33, 0
      %p96 = por %p94, %p95
      %p97 = scmp.ne.s32.totalorder %s83, %s84
      %p98 = scmp.eq.s32.totalorder %s34, 7
      %p99 = por %p97, %p98
      %p101 = scmp.ne.s32.totalorder %s84, %s100
      %p102 = scmp.eq.s32.totalorder %s34, 0
      %p103 = por %p101, %p102
      %s104 = sadd.s32 %s36, 4
      %s105 = sadd.s32 %s43, 4
      %s106 = ssub.s32 %s35, %s47
      %s107 = ssub.s32 %s104, %s105
      %s108 = sor.u32 %s106, %s107
      %p109 = scmp.eq.s32.totalorder %s108, 0
      %s111 = sadd.s32 %s110, 1
      %s112 = scalar_select %p109, %s110, %s111
      %p115 = pneg %p109
      %p116 = scmp.eq.s32.totalorder %s28, 7
      %p117 = por %p115, %p116
      %p118 = scmp.ne.s32.totalorder %s110, %s113
      %p119 = scmp.eq.s32.totalorder %s28, 0
      %p120 = por %p118, %p119
      %p121 = scmp.ne.s32.totalorder %s110, %s113
      %p122 = scmp.eq.s32.totalorder %s33, 7
      %p123 = por %p121, %p122
      %p124 = scmp.ne.s32.totalorder %s113, %s114
      %p125 = scmp.eq.s32.totalorder %s33, 0
      %p126 = por %p124, %p125
      %p127 = scmp.ne.s32.totalorder %s113, %s114
      %p128 = scmp.eq.s32.totalorder %s34, 7
      %p129 = por %p127, %p128
      %p131 = scmp.ne.s32.totalorder %s114, %s130
      %p132 = scmp.eq.s32.totalorder %s34, 0
      %p133 = por %p131, %p132
      %s134 = sadd.s32 %s36, 8
      %s135 = sadd.s32 %s43, 8
      %s136 = ssub.s32 %s35, %s47
      %s137 = ssub.s32 %s134, %s135
      %s138 = sor.u32 %s136, %s137
      %p139 = scmp.eq.s32.totalorder %s138, 0
      %s141 = sadd.s32 %s140, 1
      %s142 = scalar_select %p139, %s140, %s141
      %p145 = pneg %p139
      %p146 = scmp.eq.s32.totalorder %s28, 7
      %p147 = por %p145, %p146
      %p148 = scmp.ne.s32.totalorder %s140, %s143
      %p149 = scmp.eq.s32.totalorder %s28, 0
      %p150 = por %p148, %p149
      %p151 = scmp.ne.s32.totalorder %s140, %s143
      %p152 = scmp.eq.s32.totalorder %s33, 7
      %p153 = por %p151, %p152
      %p154 = scmp.ne.s32.totalorder %s143, %s144
      %p155 = scmp.eq.s32.totalorder %s33, 0
      %p156 = por %p154, %p155
      %p157 = scmp.ne.s32.totalorder %s143, %s144
      %p158 = scmp.eq.s32.totalorder %s34, 7
      %p159 = por %p157, %p158
      %p161 = scmp.ne.s32.totalorder %s144, %s160
      %p162 = scmp.eq.s32.totalorder %s34, 0
      %p163 = por %p161, %p162
      %s164 = sadd.s32 %s36, 12
      %s165 = sadd.s32 %s43, 12
      %s166 = ssub.s32 %s35, %s47
      %s167 = ssub.s32 %s164, %s165
      %s168 = sor.u32 %s166, %s167
      %p169 = scmp.eq.s32.totalorder %s168, 0
      %s171 = sadd.s32 %s170, 1
      %s172 = scalar_select %p169, %s170, %s171
      %p175 = pneg %p169
      %p176 = scmp.eq.s32.totalorder %s28, 7
      %p177 = por %p175, %p176
      %p178 = scmp.ne.s32.totalorder %s170, %s173
      %p179 = scmp.eq.s32.totalorder %s28, 0
      %p180 = por %p178, %p179
      %p181 = scmp.ne.s32.totalorder %s170, %s173
      %p182 = scmp.eq.s32.totalorder %s33, 7
      %p183 = por %p181, %p182
      %p184 = scmp.ne.s32.totalorder %s173, %s174
      %p185 = scmp.eq.s32.totalorder %s33, 0
      %p186 = por %p184, %p185
      %p187 = scmp.ne.s32.totalorder %s173, %s174
      %p188 = scmp.eq.s32.totalorder %s34, 7
      %p189 = por %p187, %p188
      %p191 = scmp.ne.s32.totalorder %s174, %s190
      %p192 = scmp.eq.s32.totalorder %s34, 0
      %p193 = por %p191, %p192
      %s194 = ssub.s32 %s35, %s47
      %s195 = ssub.s32 %s36, %s43
      %s196 = sor.u32 %s194, %s195
      %p197 = scmp.eq.s32.totalorder %s196, 0
      %s199 = sadd.s32 %s198, 1
      %s200 = scalar_select %p197, %s198, %s199
      %p203 = pneg %p197
      %p204 = scmp.eq.s32.totalorder %s28, 7
      %p205 = por %p203, %p204
      %p206 = scmp.ne.s32.totalorder %s198, %s201
      %p207 = scmp.eq.s32.totalorder %s28, 0
      %p208 = por %p206, %p207
      %p209 = scmp.ne.s32.totalorder %s198, %s201
      %p210 = scmp.eq.s32.totalorder %s33, 7
      %p211 = por %p209, %p210
      %p212 = scmp.ne.s32.totalorder %s201, %s202
      %p213 = scmp.eq.s32.totalorder %s33, 0
      %p214 = por %p212, %p213
      %p215 = scmp.ne.s32.totalorder %s201, %s202
      %p216 = scmp.eq.s32.totalorder %s34, 7
      %p217 = por %p215, %p216
      %p219 = scmp.ne.s32.totalorder %s202, %s218
      %p220 = scmp.eq.s32.totalorder %s34, 0
      %p221 = por %p219, %p220
      %s222 = ssub.s32 %s35, %s47
      %s223 = ssub.s32 %s36, %s43
      %s224 = sor.u32 %s222, %s223
      %p225 = scmp.eq.s32.totalorder %s224, 0
      %s227 = sadd.s32 %s226, 1
      %s228 = scalar_select %p225, %s226, %s227
      %p231 = pneg %p225
      %p232 = scmp.eq.s32.totalorder %s28, 7
      %p233 = por %p231, %p232
      %p234 = scmp.ne.s32.totalorder %s226, %s229
      %p235 = scmp.eq.s32.totalorder %s28, 0
      %p236 = por %p234, %p235
      %p237 = scmp.ne.s32.totalorder %s226, %s229
      %p238 = scmp.eq.s32.totalorder %s33, 7
      %p239 = por %p237, %p238
      %p240 = scmp.ne.s32.totalorder %s229, %s230
      %p241 = scmp.eq.s32.totalorder %s33, 0
      %p242 = por %p240, %p241
      %p243 = scmp.ne.s32.totalorder %s229, %s230
      %p244 = scmp.eq.s32.totalorder %s34, 7
      %p245 = por %p243, %p244
      %p247 = scmp.ne.s32.totalorder %s230, %s246
      %p248 = scmp.eq.s32.totalorder %s34, 0
      %p249 = por %p247, %p248
      %p250 = scmp.le.s32.totalorder 1, %s28
      %p251 = scmp.lt.s32.totalorder %s28, 9
      %p252 = pnand %p250, %p251
      %p253 = pneg %p252
      // Predicated region
      $region9: #{tpu_custom_call.1} parent=5 // pred_check
        _
      $region10: #{tpu_custom_call.1} parent=5 // pred_check_branch
        %255 = sbr.rel (%p252) target = $region12
      $region11: #{tpu_custom_call.1} parent=5 // pred_region
        %s256 = ssub.s32 %s28, 1
      $region12: #{tpu_custom_call.1} parent=5 // pred_fallthru
        _
      %p257 = scmp.lt.s32.totalorder %s28, 8
      // Predicated region
      $region13: #{tpu_custom_call.1} parent=5 // pred_check
        %p258 = pneg %p257
      $region14: #{tpu_custom_call.1} parent=5 // pred_check_branch
        %260 = sbr.rel (%p258) target = $region16
      $region15: #{tpu_custom_call.1} parent=5 // pred_region
        // Predicated region
        $region17: #{tpu_custom_call.1} parent=15 // pred_check
          %p261 = pneg %p62
        $region18: #{tpu_custom_call.1} parent=15 // pred_check_branch
          %263 = sbr.rel (%p261) target = $region20
        $region19: #{tpu_custom_call.1} parent=15 // pred_region
          %s264 = sand.u32 %s52, 1
          %s265 = scalar_lea.sflag [#allocation6], %s264
          %s266 = sand.u32 %s52, 1
          %s267 = smul.addr %s266, 128
          %s268 = scalar_lea.vmem [#allocation5], %s267
          %s270 = ssub.s32 2048, 2048
          %271 = vsyncadd %s265, %s270
          %s272 = smul.addr %s36, 16
          %s273 = smul.addr %s35, 64
          %s274 = sadd.s32 %s272, %s273
          %s275 = smul.addr %s274, 128
          %s276 = scalar_lea.hbm %s0, %s275
          %s277 = sshll.u32 %s268, 4
          %s278 = int_to_ptr.vmem [resolvable:$true] %s277
          %283 = dma.hbm_to_vmem [thread:$0]  %s276, 2048, %s278, %s265, 128, 128, 8
        $region20: #{tpu_custom_call.1} parent=15 // pred_fallthru
          _
        // Predicated region
        $region21: #{tpu_custom_call.1} parent=15 // pred_check
          %p284 = pneg %p90
        $region22: #{tpu_custom_call.1} parent=15 // pred_check_branch
          %286 = sbr.rel (%p284) target = $region24
        $region23: #{tpu_custom_call.1} parent=15 // pred_region
          %s287 = sand.u32 %s28, 1
          %s288 = scalar_lea.sflag [#allocation9], %s287
          %s289 = sand.u32 %s80, 1
          %s290 = smul.addr %s289, 80
          %s291 = scalar_lea.vmem [#allocation8], %s290
          %s292 = smul.u32 5, %s36
          %s294 = ssub.s32 1280, 1280
          %295 = vsyncadd %s288, %s294
          %s296 = smul.addr %s292, 2
          %s297 = smul.addr %s35, 160
          %s298 = sadd.s32 %s296, %s297
          %s299 = smul.addr %s298, 128
          %s300 = scalar_lea.hbm %s1, %s299
          %s301 = sshll.u32 %s291, 4
          %s302 = int_to_ptr.vmem [resolvable:$true] %s301
          %307 = dma.hbm_to_vmem [thread:$0]  %s300, 1280, %s302, %s288, 128, 128, 8
        $region24: #{tpu_custom_call.1} parent=15 // pred_fallthru
          _
        // Predicated region
        $region25: #{tpu_custom_call.1} parent=15 // pred_check
          %p308 = pneg %p120
        $region26: #{tpu_custom_call.1} parent=15 // pred_check_branch
          %310 = sbr.rel (%p308) target = $region28
        $region27: #{tpu_custom_call.1} parent=15 // pred_region
          %s311 = sand.u32 %s28, 1
          %s312 = scalar_lea.sflag [#allocation9], %s311
          %s313 = sand.u32 %s110, 1
          %s314 = smul.addr %s313, 80
          %s315 = scalar_lea.vmem [#allocation10], %s314
          %s316 = sadd.s32 %s36, 4
          %s317 = smul.u32 5, %s316
          %s319 = ssub.s32 1280, 1280
          %320 = vsyncadd %s312, %s319
          %s321 = smul.addr %s317, 2
          %s322 = smul.addr %s35, 160
          %s323 = sadd.s32 %s321, %s322
          %s324 = smul.addr %s323, 128
          %s325 = scalar_lea.hbm %s2, %s324
          %s326 = sshll.u32 %s315, 4
          %s327 = int_to_ptr.vmem [resolvable:$true] %s326
          %332 = dma.hbm_to_vmem [thread:$0]  %s325, 1280, %s327, %s312, 128, 128, 8
        $region28: #{tpu_custom_call.1} parent=15 // pred_fallthru
          _
        // Predicated region
        $region29: #{tpu_custom_call.1} parent=15 // pred_check
          %p333 = pneg %p150
        $region30: #{tpu_custom_call.1} parent=15 // pred_check_branch
          %335 = sbr.rel (%p333) target = $region32
        $region31: #{tpu_custom_call.1} parent=15 // pred_region
          %s336 = sand.u32 %s28, 1
          %s337 = scalar_lea.sflag [#allocation12], %s336
          %s338 = sand.u32 %s140, 1
          %s339 = smul.addr %s338, 80
          %s340 = scalar_lea.vmem [#allocation11], %s339
          %s341 = sadd.s32 %s36, 8
          %s342 = smul.u32 5, %s341
          %s344 = ssub.s32 1280, 1280
          %345 = vsyncadd %s337, %s344
          %s346 = smul.addr %s342, 2
          %s347 = smul.addr %s35, 160
          %s348 = sadd.s32 %s346, %s347
          %s349 = smul.addr %s348, 128
          %s350 = scalar_lea.hbm %s3, %s349
          %s351 = sshll.u32 %s340, 4
          %s352 = int_to_ptr.vmem [resolvable:$true] %s351
          %357 = dma.hbm_to_vmem [thread:$0]  %s350, 1280, %s352, %s337, 128, 128, 8
        $region32: #{tpu_custom_call.1} parent=15 // pred_fallthru
          _
        // Predicated region
        $region33: #{tpu_custom_call.1} parent=15 // pred_check
          %p358 = pneg %p180
        $region34: #{tpu_custom_call.1} parent=15 // pred_check_branch
          %360 = sbr.rel (%p358) target = $region36
        $region35: #{tpu_custom_call.1} parent=15 // pred_region
          %s361 = sand.u32 %s28, 1
          %s362 = scalar_lea.sflag [#allocation12], %s361
          %s363 = sand.u32 %s170, 1
          %s364 = smul.addr %s363, 80
          %s365 = scalar_lea.vmem [#allocation13], %s364
          %s366 = sadd.s32 %s36, 12
          %s367 = smul.u32 5, %s366
          %s369 = ssub.s32 1280, 1280
          %370 = vsyncadd %s362, %s369
          %s371 = smul.addr %s367, 2
          %s372 = smul.addr %s35, 160
          %s373 = sadd.s32 %s371, %s372
          %s374 = smul.addr %s373, 128
          %s375 = scalar_lea.hbm %s4, %s374
          %s376 = sshll.u32 %s365, 4
          %s377 = int_to_ptr.vmem [resolvable:$true] %s376
          %382 = dma.hbm_to_vmem [thread:$0]  %s375, 1280, %s377, %s362, 128, 128, 8
        $region36: #{tpu_custom_call.1} parent=15 // pred_fallthru
          _
      $region16: #{tpu_custom_call.1} parent=5 // pred_fallthru
        _
      %p383 = scmp.le.s32.totalorder 1, %s28
      %p384 = scmp.lt.s32.totalorder %s28, 9
      %p385 = pnand %p383, %p384
      %p386 = pneg %p385
      // Predicated region
      $region37: #{tpu_custom_call.1} parent=5 // pred_check
        _
      $region38: #{tpu_custom_call.1} parent=5 // pred_check_branch
        %388 = sbr.rel (%p385) target = $region40
      $region39: #{tpu_custom_call.1} parent=5 // pred_region
        %s389 = ssub.s32 %s28, 1
        %s390 = sand.u32 %s55, 1
        %s391 = scalar_lea.sflag [#allocation6], %s390
        %s392 = sand.u32 %s55, 1
        %s393 = smul.addr %s392, 128
        %s394 = scalar_lea.vmem [#allocation5], %s393
        // Predicated region
        $region41: #{tpu_custom_call.1} parent=39 // pred_check
          %p395 = pneg %p68
        $region42: #{tpu_custom_call.1} parent=39 // pred_check_branch
          %397 = sbr.rel (%p395) target = $region44
        $region43: #{tpu_custom_call.1} parent=39 // pred_region
          %398 = dma.done %s391, 2048
        $region44: #{tpu_custom_call.1} parent=39 // pred_fallthru
          _
        %s399 = sand.u32 %s33, 1
        %s400 = scalar_lea.sflag [#allocation9], %s399
        %s401 = sand.u32 %s83, 1
        %s402 = smul.addr %s401, 80
        %s403 = scalar_lea.vmem [#allocation8], %s402
        // Predicated region
        $region45: #{tpu_custom_call.1} parent=39 // pred_check
          %p404 = pneg %p96
        $region46: #{tpu_custom_call.1} parent=39 // pred_check_branch
          %406 = sbr.rel (%p404) target = $region48
        $region47: #{tpu_custom_call.1} parent=39 // pred_region
          %407 = dma.done %s400, 1280
        $region48: #{tpu_custom_call.1} parent=39 // pred_fallthru
          _
        %s408 = sand.u32 %s33, 1
        %s409 = scalar_lea.sflag [#allocation9], %s408
        %s410 = sand.u32 %s113, 1
        %s411 = smul.addr %s410, 80
        %s412 = scalar_lea.vmem [#allocation10], %s411
        // Predicated region
        $region49: #{tpu_custom_call.1} parent=39 // pred_check
          %p413 = pneg %p126
        $region50: #{tpu_custom_call.1} parent=39 // pred_check_branch
          %415 = sbr.rel (%p413) target = $region52
        $region51: #{tpu_custom_call.1} parent=39 // pred_region
          %416 = dma.done %s409, 1280
        $region52: #{tpu_custom_call.1} parent=39 // pred_fallthru
          _
        %s417 = sand.u32 %s33, 1
        %s418 = scalar_lea.sflag [#allocation12], %s417
        %s419 = sand.u32 %s143, 1
        %s420 = smul.addr %s419, 80
        %s421 = scalar_lea.vmem [#allocation11], %s420
        // Predicated region
        $region53: #{tpu_custom_call.1} parent=39 // pred_check
          %p422 = pneg %p156
        $region54: #{tpu_custom_call.1} parent=39 // pred_check_branch
          %424 = sbr.rel (%p422) target = $region56
        $region55: #{tpu_custom_call.1} parent=39 // pred_region
          %425 = dma.done %s418, 1280
        $region56: #{tpu_custom_call.1} parent=39 // pred_fallthru
          _
        %s426 = sand.u32 %s33, 1
        %s427 = scalar_lea.sflag [#allocation12], %s426
        %s428 = sand.u32 %s173, 1
        %s429 = smul.addr %s428, 80
        %s430 = scalar_lea.vmem [#allocation13], %s429
        // Predicated region
        $region57: #{tpu_custom_call.1} parent=39 // pred_check
          %p431 = pneg %p186
        $region58: #{tpu_custom_call.1} parent=39 // pred_check_branch
          %433 = sbr.rel (%p431) target = $region60
        $region59: #{tpu_custom_call.1} parent=39 // pred_region
          %434 = dma.done %s427, 1280
        $region60: #{tpu_custom_call.1} parent=39 // pred_fallthru
          _
        %s435 = sand.u32 %s55, 1
        %s436 = scalar_lea.sflag [#allocation6], %s435
        %s437 = sand.u32 %s55, 1
        %s438 = smul.addr %s437, 128
        %s439 = scalar_lea.vmem [#allocation5], %s438
        %p440 = pneg %p68
        %p441 = pneg %p65
        %s442 = sand.u32 %s33, 1
        %s443 = scalar_lea.sflag [#allocation9], %s442
        %s444 = sand.u32 %s83, 1
        %s445 = smul.addr %s444, 80
        %s446 = scalar_lea.vmem [#allocation8], %s445
        %p447 = pneg %p96
        %p448 = pneg %p93
        %s449 = sand.u32 %s33, 1
        %s450 = scalar_lea.sflag [#allocation9], %s449
        %s451 = sand.u32 %s113, 1
        %s452 = smul.addr %s451, 80
        %s453 = scalar_lea.vmem [#allocation10], %s452
        %p454 = pneg %p126
        %p455 = pneg %p123
        %s456 = sand.u32 %s33, 1
        %s457 = scalar_lea.sflag [#allocation12], %s456
        %s458 = sand.u32 %s143, 1
        %s459 = smul.addr %s458, 80
        %s460 = scalar_lea.vmem [#allocation11], %s459
        %p461 = pneg %p156
        %p462 = pneg %p153
        %s463 = sand.u32 %s33, 1
        %s464 = scalar_lea.sflag [#allocation12], %s463
        %s465 = sand.u32 %s173, 1
        %s466 = smul.addr %s465, 80
        %s467 = scalar_lea.vmem [#allocation13], %s466
        %p468 = pneg %p186
        %p469 = pneg %p183
        %p470 = pneg %p214
        %p471 = pneg %p211
        %s472 = sand.u32 %s201, 1
        %s473 = scalar_lea.sflag [#allocation7], %s472
        %s474 = sand.u32 %s201, 1
        %s475 = smul.addr %s474, 128
        %s476 = scalar_lea.vmem [#allocation14], %s475
        %p477 = pneg %p242
        %p478 = pneg %p239
        %s479 = sand.u32 %s229, 1
        %s480 = scalar_lea.sflag [#allocation16], %s479
        %s481 = sand.u32 %s229, 1
        %s482 = smul.addr %s481, 2
        %s483 = scalar_lea.vmem [#allocation15], %s482
        %s484 = smul.u32 5, %s38
        %s485 = sadd.s32 %s38, 4
        %s486 = smul.u32 5, %s485
        %s487 = sadd.s32 %s38, 8
        %s488 = smul.u32 5, %s487
        %s489 = sadd.s32 %s38, 12
        %s490 = smul.u32 5, %s489
        loop: start=0, step=1, limit=8
        $region61: #{tpu_custom_call.1} parent=39 // loop_pre_header
          _
        $region62: #{tpu_custom_call.1} parent=39 // loop_header
          %s492 = sphi 0, %s496
          %p493 = scmp.ge.s32.totalorder %s492, 8
        $region63: #{tpu_custom_call.1} parent=39 // loop_header_branch
          %495 = sbr.rel (%p493) target = $region67
        $region64: #{tpu_custom_call.1} parent=39 // loop_body
          %s497 = smul.u32 %s492, 16
          %s498 = scalar_lea.vmem %s394, %s497 [#allocation5]
          %v499 = vld [vmem:[%s498] sm:$0xff]
          %v500 = vld [vmem:[%s498 + $0x8] sm:$0xff]
          %501 = vxpose.xlu0.b32.start [1/16] %v499, 128
          %502 = vxpose.xlu0.b32.cont [2/16] %v500, 128
          %503 = vxpose.xlu0.b32.cont [3/16] 0.0, 128
          %504 = vxpose.xlu0.b32.cont [4/16] 0.0, 128
          %505 = vxpose.xlu0.b32.cont [5/16] 0.0, 128
          %506 = vxpose.xlu0.b32.cont [6/16] 0.0, 128
          %507 = vxpose.xlu0.b32.cont [7/16] 0.0, 128
          %508 = vxpose.xlu0.b32.cont [8/16] 0.0, 128
          %509 = vxpose.xlu0.b32.cont [9/16] 0.0, 128
          %510 = vxpose.xlu0.b32.cont [10/16] 0.0, 128
          %511 = vxpose.xlu0.b32.cont [11/16] 0.0, 128
          %512 = vxpose.xlu0.b32.cont [12/16] 0.0, 128
          %513 = vxpose.xlu0.b32.cont [13/16] 0.0, 128
          %514 = vxpose.xlu0.b32.cont [14/16] 0.0, 128
          %515 = vxpose.xlu0.b32.cont [15/16] 0.0, 128
          %516 = vxpose.xlu0.b32.end [16/16] 0.0, 128
          %v517 = vpop.trf.xlu0
          %v518 = vpop.trf.xlu0
          %v519 = vpop.trf.xlu0
          %v520 = vpop.trf.xlu0
          %v521 = vpop.trf.xlu0
          %v522 = vpop.trf.xlu0
          %v523 = vpop.trf.xlu0
          %v524 = vpop.trf.xlu0
          %v525 = vpop.trf.xlu0
          %v526 = vpop.trf.xlu0
          %v527 = vpop.trf.xlu0
          %v528 = vpop.trf.xlu0
          %v529 = vpop.trf.xlu0
          %v530 = vpop.trf.xlu0
          %v531 = vpop.trf.xlu0
          %v532 = vpop.trf.xlu0
          %s533 = scalar_lea.vmem [#allocation2], %s497
          %vm534 = vcmask 130048
          %535 = vst.msk [vmem:[%s533] sm:$0xff] %vm534, %v517
          %536 = vst.msk [vmem:[%s533 + $0x8] sm:$0xff] %vm534, %v518
        $region65: #{tpu_custom_call.1} parent=39 // loop_footer
          %s496 = sadd.s32 1, %s492
        $region66: #{tpu_custom_call.1} parent=39 // loop_footer_branch
          %491 = sbr.rel target = $region62
        $region67: #{tpu_custom_call.1} parent=39 // loop_exit
          _
        %v537 = vld [vmem:[%s403] sm:$0xff]
        %v538 = vld [vmem:[%s403 + $0x8] sm:$0xff]
        %539 = vxpose.xlu0.b32.start [1/16] %v537, 128
        %540 = vxpose.xlu0.b32.cont [2/16] %v538, 128
        %541 = vxpose.xlu0.b32.cont [3/16] 0.0, 128
        %542 = vxpose.xlu0.b32.cont [4/16] 0.0, 128
        %543 = vxpose.xlu0.b32.cont [5/16] 0.0, 128
        %544 = vxpose.xlu0.b32.cont [6/16] 0.0, 128
        %545 = vxpose.xlu0.b32.cont [7/16] 0.0, 128
        %546 = vxpose.xlu0.b32.cont [8/16] 0.0, 128
        %547 = vxpose.xlu0.b32.cont [9/16] 0.0, 128
        %548 = vxpose.xlu0.b32.cont [10/16] 0.0, 128
        %549 = vxpose.xlu0.b32.cont [11/16] 0.0, 128
        %550 = vxpose.xlu0.b32.cont [12/16] 0.0, 128
        %551 = vxpose.xlu0.b32.cont [13/16] 0.0, 128
        %552 = vxpose.xlu0.b32.cont [14/16] 0.0, 128
        %553 = vxpose.xlu0.b32.cont [15/16] 0.0, 128
        %554 = vxpose.xlu0.b32.end [16/16] 0.0, 128
        %v555 = vpop.trf.xlu0
        %v556 = vpop.trf.xlu0
        %v557 = vpop.trf.xlu0
        %v558 = vpop.trf.xlu0
        %v559 = vpop.trf.xlu0
        %v560 = vpop.trf.xlu0
        %v561 = vpop.trf.xlu0
        %v562 = vpop.trf.xlu0
        %v563 = vpop.trf.xlu0
        %v564 = vpop.trf.xlu0
        %v565 = vpop.trf.xlu0
        %v566 = vpop.trf.xlu0
        %v567 = vpop.trf.xlu0
        %v568 = vpop.trf.xlu0
        %v569 = vpop.trf.xlu0
        %v570 = vpop.trf.xlu0
        %vm571 = vcmask 130048
        %572 = vst.msk [vmem:[#allocation4] sm:$0xff] %vm571, %v555
        %573 = vst.msk [vmem:[#allocation4 + $0x8] sm:$0xff] %vm571, %v556
        %s574 = scalar_lea.vmem %s403, 16 [#allocation8]
        %v575 = vld [vmem:[%s574] sm:$0xff]
        %v576 = vld [vmem:[%s574 + $0x8] sm:$0xff]
        %577 = vxpose.xlu0.b32.start [1/16] %v575, 128
        %578 = vxpose.xlu0.b32.cont [2/16] %v576, 128
        %579 = vxpose.xlu0.b32.cont [3/16] 0.0, 128
        %580 = vxpose.xlu0.b32.cont [4/16] 0.0, 128
        %581 = vxpose.xlu0.b32.cont [5/16] 0.0, 128
        %582 = vxpose.xlu0.b32.cont [6/16] 0.0, 128
        %583 = vxpose.xlu0.b32.cont [7/16] 0.0, 128
        %584 = vxpose.xlu0.b32.cont [8/16] 0.0, 128
        %585 = vxpose.xlu0.b32.cont [9/16] 0.0, 128
        %586 = vxpose.xlu0.b32.cont [10/16] 0.0, 128
        %587 = vxpose.xlu0.b32.cont [11/16] 0.0, 128
        %588 = vxpose.xlu0.b32.cont [12/16] 0.0, 128
        %589 = vxpose.xlu0.b32.cont [13/16] 0.0, 128
        %590 = vxpose.xlu0.b32.cont [14/16] 0.0, 128
        %591 = vxpose.xlu0.b32.cont [15/16] 0.0, 128
        %592 = vxpose.xlu0.b32.end [16/16] 0.0, 128
        %v593 = vpop.trf.xlu0
        %v594 = vpop.trf.xlu0
        %v595 = vpop.trf.xlu0
        %v596 = vpop.trf.xlu0
        %v597 = vpop.trf.xlu0
        %v598 = vpop.trf.xlu0
        %v599 = vpop.trf.xlu0
        %v600 = vpop.trf.xlu0
        %v601 = vpop.trf.xlu0
        %v602 = vpop.trf.xlu0
        %v603 = vpop.trf.xlu0
        %v604 = vpop.trf.xlu0
        %v605 = vpop.trf.xlu0
        %v606 = vpop.trf.xlu0
        %v607 = vpop.trf.xlu0
        %v608 = vpop.trf.xlu0
        %s609 = scalar_lea.vmem [#allocation4], 16
        %610 = vst.msk [vmem:[%s609] sm:$0xff] %vm571, %v593
        %611 = vst.msk [vmem:[%s609 + $0x8] sm:$0xff] %vm571, %v594
        %s612 = scalar_lea.vmem %s403, 32 [#allocation8]
        %v613 = vld [vmem:[%s612] sm:$0xff]
        %v614 = vld [vmem:[%s612 + $0x8] sm:$0xff]
        %615 = vxpose.xlu0.b32.start [1/16] %v613, 128
        %616 = vxpose.xlu0.b32.cont [2/16] %v614, 128
        %617 = vxpose.xlu0.b32.cont [3/16] 0.0, 128
        %618 = vxpose.xlu0.b32.cont [4/16] 0.0, 128
        %619 = vxpose.xlu0.b32.cont [5/16] 0.0, 128
        %620 = vxpose.xlu0.b32.cont [6/16] 0.0, 128
        %621 = vxpose.xlu0.b32.cont [7/16] 0.0, 128
        %622 = vxpose.xlu0.b32.cont [8/16] 0.0, 128
        %623 = vxpose.xlu0.b32.cont [9/16] 0.0, 128
        %624 = vxpose.xlu0.b32.cont [10/16] 0.0, 128
        %625 = vxpose.xlu0.b32.cont [11/16] 0.0, 128
        %626 = vxpose.xlu0.b32.cont [12/16] 0.0, 128
        %627 = vxpose.xlu0.b32.cont [13/16] 0.0, 128
        %628 = vxpose.xlu0.b32.cont [14/16] 0.0, 128
        %629 = vxpose.xlu0.b32.cont [15/16] 0.0, 128
        %630 = vxpose.xlu0.b32.end [16/16] 0.0, 128
        %v631 = vpop.trf.xlu0
        %v632 = vpop.trf.xlu0
        %v633 = vpop.trf.xlu0
        %v634 = vpop.trf.xlu0
        %v635 = vpop.trf.xlu0
        %v636 = vpop.trf.xlu0
        %v637 = vpop.trf.xlu0
        %v638 = vpop.trf.xlu0
        %v639 = vpop.trf.xlu0
        %v640 = vpop.trf.xlu0
        %v641 = vpop.trf.xlu0
        %v642 = vpop.trf.xlu0
        %v643 = vpop.trf.xlu0
        %v644 = vpop.trf.xlu0
        %v645 = vpop.trf.xlu0
        %v646 = vpop.trf.xlu0
        %s647 = scalar_lea.vmem [#allocation4], 32
        %648 = vst.msk [vmem:[%s647] sm:$0xff] %vm571, %v631
        %649 = vst.msk [vmem:[%s647 + $0x8] sm:$0xff] %vm571, %v632
        %s650 = scalar_lea.vmem %s403, 48 [#allocation8]
        %v651 = vld [vmem:[%s650] sm:$0xff]
        %v652 = vld [vmem:[%s650 + $0x8] sm:$0xff]
        %653 = vxpose.xlu0.b32.start [1/16] %v651, 128
        %654 = vxpose.xlu0.b32.cont [2/16] %v652, 128
        %655 = vxpose.xlu0.b32.cont [3/16] 0.0, 128
        %656 = vxpose.xlu0.b32.cont [4/16] 0.0, 128
        %657 = vxpose.xlu0.b32.cont [5/16] 0.0, 128
        %658 = vxpose.xlu0.b32.cont [6/16] 0.0, 128
        %659 = vxpose.xlu0.b32.cont [7/16] 0.0, 128
        %660 = vxpose.xlu0.b32.cont [8/16] 0.0, 128
        %661 = vxpose.xlu0.b32.cont [9/16] 0.0, 128
        %662 = vxpose.xlu0.b32.cont [10/16] 0.0, 128
        %663 = vxpose.xlu0.b32.cont [11/16] 0.0, 128
        %664 = vxpose.xlu0.b32.cont [12/16] 0.0, 128
        %665 = vxpose.xlu0.b32.cont [13/16] 0.0, 128
        %666 = vxpose.xlu0.b32.cont [14/16] 0.0, 128
        %667 = vxpose.xlu0.b32.cont [15/16] 0.0, 128
        %668 = vxpose.xlu0.b32.end [16/16] 0.0, 128
        %v669 = vpop.trf.xlu0
        %v670 = vpop.trf.xlu0
        %v671 = vpop.trf.xlu0
        %v672 = vpop.trf.xlu0
        %v673 = vpop.trf.xlu0
        %v674 = vpop.trf.xlu0
        %v675 = vpop.trf.xlu0
        %v676 = vpop.trf.xlu0
        %v677 = vpop.trf.xlu0
        %v678 = vpop.trf.xlu0
        %v679 = vpop.trf.xlu0
        %v680 = vpop.trf.xlu0
        %v681 = vpop.trf.xlu0
        %v682 = vpop.trf.xlu0
        %v683 = vpop.trf.xlu0
        %v684 = vpop.trf.xlu0
        %s685 = scalar_lea.vmem [#allocation4], 48
        %686 = vst.msk [vmem:[%s685] sm:$0xff] %vm571, %v669
        %687 = vst.msk [vmem:[%s685 + $0x8] sm:$0xff] %vm571, %v670
        %s688 = scalar_lea.vmem %s403, 64 [#allocation8]
        %v689 = vld [vmem:[%s688] sm:$0xff]
        %v690 = vld [vmem:[%s688 + $0x8] sm:$0xff]
        %691 = vxpose.xlu0.b32.start [1/16] %v689, 128
        %692 = vxpose.xlu0.b32.cont [2/16] %v690, 128
        %693 = vxpose.xlu0.b32.cont [3/16] 0.0, 128
        %694 = vxpose.xlu0.b32.cont [4/16] 0.0, 128
        %695 = vxpose.xlu0.b32.cont [5/16] 0.0, 128
        %696 = vxpose.xlu0.b32.cont [6/16] 0.0, 128
        %697 = vxpose.xlu0.b32.cont [7/16] 0.0, 128
        %698 = vxpose.xlu0.b32.cont [8/16] 0.0, 128
        %699 = vxpose.xlu0.b32.cont [9/16] 0.0, 128
        %700 = vxpose.xlu0.b32.cont [10/16] 0.0, 128
        %701 = vxpose.xlu0.b32.cont [11/16] 0.0, 128
        %702 = vxpose.xlu0.b32.cont [12/16] 0.0, 128
        %703 = vxpose.xlu0.b32.cont [13/16] 0.0, 128
        %704 = vxpose.xlu0.b32.cont [14/16] 0.0, 128
        %705 = vxpose.xlu0.b32.cont [15/16] 0.0, 128
        %706 = vxpose.xlu0.b32.end [16/16] 0.0, 128
        %v707 = vpop.trf.xlu0
        %v708 = vpop.trf.xlu0
        %v709 = vpop.trf.xlu0
        %v710 = vpop.trf.xlu0
        %v711 = vpop.trf.xlu0
        %v712 = vpop.trf.xlu0
        %v713 = vpop.trf.xlu0
        %v714 = vpop.trf.xlu0
        %v715 = vpop.trf.xlu0
        %v716 = vpop.trf.xlu0
        %v717 = vpop.trf.xlu0
        %v718 = vpop.trf.xlu0
        %v719 = vpop.trf.xlu0
        %v720 = vpop.trf.xlu0
        %v721 = vpop.trf.xlu0
        %v722 = vpop.trf.xlu0
        %s723 = scalar_lea.vmem [#allocation4], 64
        %724 = vst.msk [vmem:[%s723] sm:$0xff] %vm571, %v707
        %725 = vst.msk [vmem:[%s723 + $0x8] sm:$0xff] %vm571, %v708
        loop: start=0, step=1, limit=16
        $region68: #{tpu_custom_call.1} parent=39 // loop_pre_header
          _
        $region69: #{tpu_custom_call.1} parent=39 // loop_header
          %s727 = sphi 0, %s731
          %p728 = scmp.ge.s32.totalorder %s727, 16
          %v732 = vphi 0.0, %v849
          %v733 = vphi 0.0, %v850
          %v734 = vphi 0.0, %v851
          %v735 = vphi 0.0, %v852
          %v736 = vphi 0.0, %v853
          %v737 = vphi 0.0, %v854
          %v738 = vphi 0.0, %v855
          %v739 = vphi 0.0, %v856
        $region70: #{tpu_custom_call.1} parent=39 // loop_header_branch
          %730 = sbr.rel (%p728) target = $region74
        $region71: #{tpu_custom_call.1} parent=39 // loop_body
          %s740 = scalar_lea.vmem [#allocation2], %s727
          %v741 = vld [vmem:[%s740] sm:$0x1]
          %v742 = vld [vmem:[%s740 + $0x10] sm:$0x1]
          %v743 = vld [vmem:[%s740 + $0x20] sm:$0x1]
          %v744 = vld [vmem:[%s740 + $0x30] sm:$0x1]
          %v745 = vld [vmem:[%s740 + $0x40] sm:$0x1]
          %v746 = vld [vmem:[%s740 + $0x50] sm:$0x1]
          %v747 = vld [vmem:[%s740 + $0x60] sm:$0x1]
          %v748 = vld [vmem:[%s740 + $0x70] sm:$0x1]
          %s749 = scalar_lea.vmem [#allocation4], %s727
          %v750 = vld [vmem:[%s749] sm:$0x1]
          %v751 = vld [vmem:[%s749 + $0x10] sm:$0x1]
          %v752 = vld [vmem:[%s749 + $0x20] sm:$0x1]
          %v753 = vld [vmem:[%s749 + $0x30] sm:$0x1]
          %v754 = vld [vmem:[%s749 + $0x40] sm:$0x1]
          %v755 = vand.u32 2147483647, %v750
          %v756 = vand.u32 2147483647, %v751
          %v757 = vand.u32 2147483647, %v752
          %v758 = vand.u32 2147483647, %v753
          %v759 = vand.u32 2147483647, %v754
          %vm760 = vcmask 122880
          %v761 = vsel %vm760, %v755, 0.0
          %v762 = vsel %vm760, %v756, 0.0
          %v763 = vadd.f32 %v761, %v762
          %v764 = vsel %vm760, %v757, 0.0
          %v765 = vadd.f32 %v763, %v764
          %v766 = vsel %vm760, %v758, 0.0
          %v767 = vadd.f32 %v765, %v766
          %v768 = vsel %vm760, %v759, 0.0
          %v769 = vadd.f32 %v767, %v768
          %v770 = vmax.f32 %v769, 1e-12
          %v771 = vrcp.pop %v770
          %v772 = vmul.f32 %v750, %v771
          %v773 = vmul.f32 %v751, %v771
          %v774 = vmul.f32 %v752, %v771
          %v775 = vmul.f32 %v753, %v771
          %v776 = vmul.f32 %v754, %v771
          %v777 = vsel %vm760, %v732, -inf
          %v778 = vsel %vm760, %v733, -inf
          %v779 = vsel %vm760, %v734, -inf
          %v780 = vsel %vm760, %v735, -inf
          %v781 = vsel %vm760, %v736, -inf
          %v782 = vmax.f32 %v777, %v781
          %v783 = vsel %vm760, %v737, -inf
          %v784 = vmax.f32 %v778, %v783
          %v785 = vsel %vm760, %v738, -inf
          %v786 = vmax.f32 %v779, %v785
          %v787 = vsel %vm760, %v739, -inf
          %v788 = vmax.f32 %v780, %v787
          %v789 = vmax.f32 %v782, %v784
          %v790 = vmax.f32 %v786, %v788
          %v791 = vmax.f32 %v789, %v790
          %v792 = vmul.f32 %v772, %v741
          %v793 = vmul.f32 %v772, %v742
          %v794 = vmul.f32 %v772, %v743
          %v795 = vmul.f32 %v772, %v744
          %v796 = vmul.f32 %v772, %v745
          %v797 = vmul.f32 %v772, %v746
          %v798 = vmul.f32 %v772, %v747
          %v799 = vmul.f32 %v772, %v748
          %v800 = vmul.f32 %v773, %v732
          %v801 = vmul.f32 %v773, %v733
          %v802 = vmul.f32 %v773, %v734
          %v803 = vmul.f32 %v773, %v735
          %v804 = vmul.f32 %v773, %v736
          %v805 = vmul.f32 %v773, %v737
          %v806 = vmul.f32 %v773, %v738
          %v807 = vmul.f32 %v773, %v739
          %v808 = vadd.f32 %v792, %v800
          %v809 = vadd.f32 %v793, %v801
          %v810 = vadd.f32 %v794, %v802
          %v811 = vadd.f32 %v795, %v803
          %v812 = vadd.f32 %v796, %v804
          %v813 = vadd.f32 %v797, %v805
          %v814 = vadd.f32 %v798, %v806
          %v815 = vadd.f32 %v799, %v807
          %v816 = vmul.f32 %v774, 0.0
          %v817 = vmul.f32 %v774, %v732
          %v818 = vmul.f32 %v774, %v733
          %v819 = vmul.f32 %v774, %v734
          %v820 = vmul.f32 %v774, %v735
          %v821 = vmul.f32 %v774, %v736
          %v822 = vmul.f32 %v774, %v737
          %v823 = vmul.f32 %v774, %v738
          %v824 = vadd.f32 %v808, %v816
          %v825 = vadd.f32 %v809, %v817
          %v826 = vadd.f32 %v810, %v818
          %v827 = vadd.f32 %v811, %v819
          %v828 = vadd.f32 %v812, %v820
          %v829 = vadd.f32 %v813, %v821
          %v830 = vadd.f32 %v814, %v822
          %v831 = vadd.f32 %v815, %v823
          %v832 = vmul.f32 %v775, %v733
          %v833 = vmul.f32 %v775, %v734
          %v834 = vmul.f32 %v775, %v735
          %v835 = vmul.f32 %v775, %v736
          %v836 = vmul.f32 %v775, %v737
          %v837 = vmul.f32 %v775, %v738
          %v838 = vmul.f32 %v775, %v739
          %v839 = vmul.f32 %v775, 0.0
          %v840 = vadd.f32 %v824, %v832
          %v841 = vadd.f32 %v825, %v833
          %v842 = vadd.f32 %v826, %v834
          %v843 = vadd.f32 %v827, %v835
          %v844 = vadd.f32 %v828, %v836
          %v845 = vadd.f32 %v829, %v837
          %v846 = vadd.f32 %v830, %v838
          %v847 = vadd.f32 %v831, %v839
          %v848 = vmul.f32 %v776, %v791
          %v849 = vadd.f32 %v840, %v848
          %v850 = vadd.f32 %v841, %v848
          %v851 = vadd.f32 %v842, %v848
          %v852 = vadd.f32 %v843, %v848
          %v853 = vadd.f32 %v844, %v848
          %v854 = vadd.f32 %v845, %v848
          %v855 = vadd.f32 %v846, %v848
          %v856 = vadd.f32 %v847, %v848
          %s857 = scalar_lea.vmem [#allocation3], %s727
          %858 = vst.msk [vmem:[%s857] sm:$0x1] %vm760, %v849
          %859 = vst.msk [vmem:[%s857 + $0x10] sm:$0x1] %vm760, %v850
          %860 = vst.msk [vmem:[%s857 + $0x20] sm:$0x1] %vm760, %v851
          %861 = vst.msk [vmem:[%s857 + $0x30] sm:$0x1] %vm760, %v852
          %862 = vst.msk [vmem:[%s857 + $0x40] sm:$0x1] %vm760, %v853
          %863 = vst.msk [vmem:[%s857 + $0x50] sm:$0x1] %vm760, %v854
          %864 = vst.msk [vmem:[%s857 + $0x60] sm:$0x1] %vm760, %v855
          %865 = vst.msk [vmem:[%s857 + $0x70] sm:$0x1] %vm760, %v856
        $region72: #{tpu_custom_call.1} parent=39 // loop_footer
          %s731 = sadd.s32 1, %s727
        $region73: #{tpu_custom_call.1} parent=39 // loop_footer_branch
          %726 = sbr.rel target = $region69
        $region74: #{tpu_custom_call.1} parent=39 // loop_exit
          _
        %v866 = vld [vmem:[%s412] sm:$0xff]
        %v867 = vld [vmem:[%s412 + $0x8] sm:$0xff]
        %868 = vxpose.xlu0.b32.start [1/16] %v866, 128
        %869 = vxpose.xlu0.b32.cont [2/16] %v867, 128
        %870 = vxpose.xlu0.b32.cont [3/16] 0.0, 128
        %871 = vxpose.xlu0.b32.cont [4/16] 0.0, 128
        %872 = vxpose.xlu0.b32.cont [5/16] 0.0, 128
        %873 = vxpose.xlu0.b32.cont [6/16] 0.0, 128
        %874 = vxpose.xlu0.b32.cont [7/16] 0.0, 128
        %875 = vxpose.xlu0.b32.cont [8/16] 0.0, 128
        %876 = vxpose.xlu0.b32.cont [9/16] 0.0, 128
        %877 = vxpose.xlu0.b32.cont [10/16] 0.0, 128
        %878 = vxpose.xlu0.b32.cont [11/16] 0.0, 128
        %879 = vxpose.xlu0.b32.cont [12/16] 0.0, 128
        %880 = vxpose.xlu0.b32.cont [13/16] 0.0, 128
        %881 = vxpose.xlu0.b32.cont [14/16] 0.0, 128
        %882 = vxpose.xlu0.b32.cont [15/16] 0.0, 128
        %883 = vxpose.xlu0.b32.end [16/16] 0.0, 128
        %v884 = vpop.trf.xlu0
        %v885 = vpop.trf.xlu0
        %v886 = vpop.trf.xlu0
        %v887 = vpop.trf.xlu0
        %v888 = vpop.trf.xlu0
        %v889 = vpop.trf.xlu0
        %v890 = vpop.trf.xlu0
        %v891 = vpop.trf.xlu0
        %v892 = vpop.trf.xlu0
        %v893 = vpop.trf.xlu0
        %v894 = vpop.trf.xlu0
        %v895 = vpop.trf.xlu0
        %v896 = vpop.trf.xlu0
        %v897 = vpop.trf.xlu0
        %v898 = vpop.trf.xlu0
        %v899 = vpop.trf.xlu0
        %900 = vst.msk [vmem:[#allocation4] sm:$0xff] %vm571, %v884
        %901 = vst.msk [vmem:[#allocation4 + $0x8] sm:$0xff] %vm571, %v885
        %s902 = scalar_lea.vmem %s412, 16 [#allocation10]
        %v903 = vld [vmem:[%s902] sm:$0xff]
        %v904 = vld [vmem:[%s902 + $0x8] sm:$0xff]
        %905 = vxpose.xlu0.b32.start [1/16] %v903, 128
        %906 = vxpose.xlu0.b32.cont [2/16] %v904, 128
        %907 = vxpose.xlu0.b32.cont [3/16] 0.0, 128
        %908 = vxpose.xlu0.b32.cont [4/16] 0.0, 128
        %909 = vxpose.xlu0.b32.cont [5/16] 0.0, 128
        %910 = vxpose.xlu0.b32.cont [6/16] 0.0, 128
        %911 = vxpose.xlu0.b32.cont [7/16] 0.0, 128
        %912 = vxpose.xlu0.b32.cont [8/16] 0.0, 128
        %913 = vxpose.xlu0.b32.cont [9/16] 0.0, 128
        %914 = vxpose.xlu0.b32.cont [10/16] 0.0, 128
        %915 = vxpose.xlu0.b32.cont [11/16] 0.0, 128
        %916 = vxpose.xlu0.b32.cont [12/16] 0.0, 128
        %917 = vxpose.xlu0.b32.cont [13/16] 0.0, 128
        %918 = vxpose.xlu0.b32.cont [14/16] 0.0, 128
        %919 = vxpose.xlu0.b32.cont [15/16] 0.0, 128
        %920 = vxpose.xlu0.b32.end [16/16] 0.0, 128
        %v921 = vpop.trf.xlu0
        %v922 = vpop.trf.xlu0
        %v923 = vpop.trf.xlu0
        %v924 = vpop.trf.xlu0
        %v925 = vpop.trf.xlu0
        %v926 = vpop.trf.xlu0
        %v927 = vpop.trf.xlu0
        %v928 = vpop.trf.xlu0
        %v929 = vpop.trf.xlu0
        %v930 = vpop.trf.xlu0
        %v931 = vpop.trf.xlu0
        %v932 = vpop.trf.xlu0
        %v933 = vpop.trf.xlu0
        %v934 = vpop.trf.xlu0
        %v935 = vpop.trf.xlu0
        %v936 = vpop.trf.xlu0
        %937 = vst.msk [vmem:[%s609] sm:$0xff] %vm571, %v921
        %938 = vst.msk [vmem:[%s609 + $0x8] sm:$0xff] %vm571, %v922
        %s939 = scalar_lea.vmem %s412, 32 [#allocation10]
        %v940 = vld [vmem:[%s939] sm:$0xff]
        %v941 = vld [vmem:[%s939 + $0x8] sm:$0xff]
        %942 = vxpose.xlu0.b32.start [1/16] %v940, 128
        %943 = vxpose.xlu0.b32.cont [2/16] %v941, 128
        %944 = vxpose.xlu0.b32.cont [3/16] 0.0, 128
        %945 = vxpose.xlu0.b32.cont [4/16] 0.0, 128
        %946 = vxpose.xlu0.b32.cont [5/16] 0.0, 128
        %947 = vxpose.xlu0.b32.cont [6/16] 0.0, 128
        %948 = vxpose.xlu0.b32.cont [7/16] 0.0, 128
        %949 = vxpose.xlu0.b32.cont [8/16] 0.0, 128
        %950 = vxpose.xlu0.b32.cont [9/16] 0.0, 128
        %951 = vxpose.xlu0.b32.cont [10/16] 0.0, 128
        %952 = vxpose.xlu0.b32.cont [11/16] 0.0, 128
        %953 = vxpose.xlu0.b32.cont [12/16] 0.0, 128
        %954 = vxpose.xlu0.b32.cont [13/16] 0.0, 128
        %955 = vxpose.xlu0.b32.cont [14/16] 0.0, 128
        %956 = vxpose.xlu0.b32.cont [15/16] 0.0, 128
        %957 = vxpose.xlu0.b32.end [16/16] 0.0, 128
        %v958 = vpop.trf.xlu0
        %v959 = vpop.trf.xlu0
        %v960 = vpop.trf.xlu0
        %v961 = vpop.trf.xlu0
        %v962 = vpop.trf.xlu0
        %v963 = vpop.trf.xlu0
        %v964 = vpop.trf.xlu0
        %v965 = vpop.trf.xlu0
        %v966 = vpop.trf.xlu0
        %v967 = vpop.trf.xlu0
        %v968 = vpop.trf.xlu0
        %v969 = vpop.trf.xlu0
        %v970 = vpop.trf.xlu0
        %v971 = vpop.trf.xlu0
        %v972 = vpop.trf.xlu0
        %v973 = vpop.trf.xlu0
        %974 = vst.msk [vmem:[%s647] sm:$0xff] %vm571, %v958
        %975 = vst.msk [vmem:[%s647 + $0x8] sm:$0xff] %vm571, %v959
        %s976 = scalar_lea.vmem %s412, 48 [#allocation10]
        %v977 = vld [vmem:[%s976] sm:$0xff]
        %v978 = vld [vmem:[%s976 + $0x8] sm:$0xff]
        %979 = vxpose.xlu0.b32.start [1/16] %v977, 128
        %980 = vxpose.xlu0.b32.cont [2/16] %v978, 128
        %981 = vxpose.xlu0.b32.cont [3/16] 0.0, 128
        %982 = vxpose.xlu0.b32.cont [4/16] 0.0, 128
        %983 = vxpose.xlu0.b32.cont [5/16] 0.0, 128
        %984 = vxpose.xlu0.b32.cont [6/16] 0.0, 128
        %985 = vxpose.xlu0.b32.cont [7/16] 0.0, 128
        %986 = vxpose.xlu0.b32.cont [8/16] 0.0, 128
        %987 = vxpose.xlu0.b32.cont [9/16] 0.0, 128
        %988 = vxpose.xlu0.b32.cont [10/16] 0.0, 128
        %989 = vxpose.xlu0.b32.cont [11/16] 0.0, 128
        %990 = vxpose.xlu0.b32.cont [12/16] 0.0, 128
        %991 = vxpose.xlu0.b32.cont [13/16] 0.0, 128
        %992 = vxpose.xlu0.b32.cont [14/16] 0.0, 128
        %993 = vxpose.xlu0.b32.cont [15/16] 0.0, 128
        %994 = vxpose.xlu0.b32.end [16/16] 0.0, 128
        %v995 = vpop.trf.xlu0
        %v996 = vpop.trf.xlu0
        %v997 = vpop.trf.xlu0
        %v998 = vpop.trf.xlu0
        %v999 = vpop.trf.xlu0
        %v1000 = vpop.trf.xlu0
        %v1001 = vpop.trf.xlu0
        %v1002 = vpop.trf.xlu0
        %v1003 = vpop.trf.xlu0
        %v1004 = vpop.trf.xlu0
        %v1005 = vpop.trf.xlu0
        %v1006 = vpop.trf.xlu0
        %v1007 = vpop.trf.xlu0
        %v1008 = vpop.trf.xlu0
        %v1009 = vpop.trf.xlu0
        %v1010 = vpop.trf.xlu0
        %1011 = vst.msk [vmem:[%s685] sm:$0xff] %vm571, %v995
        %1012 = vst.msk [vmem:[%s685 + $0x8] sm:$0xff] %vm571, %v996
        %s1013 = scalar_lea.vmem %s412, 64 [#allocation10]
        %v1014 = vld [vmem:[%s1013] sm:$0xff]
        %v1015 = vld [vmem:[%s1013 + $0x8] sm:$0xff]
        %1016 = vxpose.xlu0.b32.start [1/16] %v1014, 128
        %1017 = vxpose.xlu0.b32.cont [2/16] %v1015, 128
        %1018 = vxpose.xlu0.b32.cont [3/16] 0.0, 128
        %1019 = vxpose.xlu0.b32.cont [4/16] 0.0, 128
        %1020 = vxpose.xlu0.b32.cont [5/16] 0.0, 128
        %1021 = vxpose.xlu0.b32.cont [6/16] 0.0, 128
        %1022 = vxpose.xlu0.b32.cont [7/16] 0.0, 128
        %1023 = vxpose.xlu0.b32.cont [8/16] 0.0, 128
        %1024 = vxpose.xlu0.b32.cont [9/16] 0.0, 128
        %1025 = vxpose.xlu0.b32.cont [10/16] 0.0, 128
        %1026 = vxpose.xlu0.b32.cont [11/16] 0.0, 128
        %1027 = vxpose.xlu0.b32.cont [12/16] 0.0, 128
        %1028 = vxpose.xlu0.b32.cont [13/16] 0.0, 128
        %1029 = vxpose.xlu0.b32.cont [14/16] 0.0, 128
        %1030 = vxpose.xlu0.b32.cont [15/16] 0.0, 128
        %1031 = vxpose.xlu0.b32.end [16/16] 0.0, 128
        %v1032 = vpop.trf.xlu0
        %v1033 = vpop.trf.xlu0
        %v1034 = vpop.trf.xlu0
        %v1035 = vpop.trf.xlu0
        %v1036 = vpop.trf.xlu0
        %v1037 = vpop.trf.xlu0
        %v1038 = vpop.trf.xlu0
        %v1039 = vpop.trf.xlu0
        %v1040 = vpop.trf.xlu0
        %v1041 = vpop.trf.xlu0
        %v1042 = vpop.trf.xlu0
        %v1043 = vpop.trf.xlu0
        %v1044 = vpop.trf.xlu0
        %v1045 = vpop.trf.xlu0
        %v1046 = vpop.trf.xlu0
        %v1047 = vpop.trf.xlu0
        %1048 = vst.msk [vmem:[%s723] sm:$0xff] %vm571, %v1032
        %1049 = vst.msk [vmem:[%s723 + $0x8] sm:$0xff] %vm571, %v1033
        loop: start=0, step=1, limit=16
        $region75: #{tpu_custom_call.1} parent=39 // loop_pre_header
          _
        $region76: #{tpu_custom_call.1} parent=39 // loop_header
          %s1051 = sphi 0, %s1055
          %p1052 = scmp.ge.s32.totalorder %s1051, 16
          %v1056 = vphi 0.0, %v1174
          %v1057 = vphi 0.0, %v1175
          %v1058 = vphi 0.0, %v1176
          %v1059 = vphi 0.0, %v1177
          %v1060 = vphi 0.0, %v1178
          %v1061 = vphi 0.0, %v1179
          %v1062 = vphi 0.0, %v1180
          %v1063 = vphi 0.0, %v1181
        $region77: #{tpu_custom_call.1} parent=39 // loop_header_branch
          %1054 = sbr.rel (%p1052) target = $region81
        $region78: #{tpu_custom_call.1} parent=39 // loop_body
          %s1064 = ssub.s32 15, %s1051
          %s1065 = scalar_lea.vmem [#allocation2], %s1064
          %v1066 = vld [vmem:[%s1065] sm:$0x1]
          %v1067 = vld [vmem:[%s1065 + $0x10] sm:$0x1]
          %v1068 = vld [vmem:[%s1065 + $0x20] sm:$0x1]
          %v1069 = vld [vmem:[%s1065 + $0x30] sm:$0x1]
          %v1070 = vld [vmem:[%s1065 + $0x40] sm:$0x1]
          %v1071 = vld [vmem:[%s1065 + $0x50] sm:$0x1]
          %v1072 = vld [vmem:[%s1065 + $0x60] sm:$0x1]
          %v1073 = vld [vmem:[%s1065 + $0x70] sm:$0x1]
          %s1074 = scalar_lea.vmem [#allocation4], %s1064
          %v1075 = vld [vmem:[%s1074] sm:$0x1]
          %v1076 = vld [vmem:[%s1074 + $0x10] sm:$0x1]
          %v1077 = vld [vmem:[%s1074 + $0x20] sm:$0x1]
          %v1078 = vld [vmem:[%s1074 + $0x30] sm:$0x1]
          %v1079 = vld [vmem:[%s1074 + $0x40] sm:$0x1]
          %v1080 = vand.u32 2147483647, %v1075
          %v1081 = vand.u32 2147483647, %v1076
          %v1082 = vand.u32 2147483647, %v1077
          %v1083 = vand.u32 2147483647, %v1078
          %v1084 = vand.u32 2147483647, %v1079
          %vm1085 = vcmask 122880
          %v1086 = vsel %vm1085, %v1080, 0.0
          %v1087 = vsel %vm1085, %v1081, 0.0
          %v1088 = vadd.f32 %v1086, %v1087
          %v1089 = vsel %vm1085, %v1082, 0.0
          %v1090 = vadd.f32 %v1088, %v1089
          %v1091 = vsel %vm1085, %v1083, 0.0
          %v1092 = vadd.f32 %v1090, %v1091
          %v1093 = vsel %vm1085, %v1084, 0.0
          %v1094 = vadd.f32 %v1092, %v1093
          %v1095 = vmax.f32 %v1094, 1e-12
          %v1096 = vrcp.pop %v1095
          %v1097 = vmul.f32 %v1075, %v1096
          %v1098 = vmul.f32 %v1076, %v1096
          %v1099 = vmul.f32 %v1077, %v1096
          %v1100 = vmul.f32 %v1078, %v1096
          %v1101 = vmul.f32 %v1079, %v1096
          %v1102 = vsel %vm1085, %v1056, -inf
          %v1103 = vsel %vm1085, %v1057, -inf
          %v1104 = vsel %vm1085, %v1058, -inf
          %v1105 = vsel %vm1085, %v1059, -inf
          %v1106 = vsel %vm1085, %v1060, -inf
          %v1107 = vmax.f32 %v1102, %v1106
          %v1108 = vsel %vm1085, %v1061, -inf
          %v1109 = vmax.f32 %v1103, %v1108
          %v1110 = vsel %vm1085, %v1062, -inf
          %v1111 = vmax.f32 %v1104, %v1110
          %v1112 = vsel %vm1085, %v1063, -inf
          %v1113 = vmax.f32 %v1105, %v1112
          %v1114 = vmax.f32 %v1107, %v1109
          %v1115 = vmax.f32 %v1111, %v1113
          %v1116 = vmax.f32 %v1114, %v1115
          %v1117 = vmul.f32 %v1097, %v1066
          %v1118 = vmul.f32 %v1097, %v1067
          %v1119 = vmul.f32 %v1097, %v1068
          %v1120 = vmul.f32 %v1097, %v1069
          %v1121 = vmul.f32 %v1097, %v1070
          %v1122 = vmul.f32 %v1097, %v1071
          %v1123 = vmul.f32 %v1097, %v1072
          %v1124 = vmul.f32 %v1097, %v1073
          %v1125 = vmul.f32 %v1098, %v1056
          %v1126 = vmul.f32 %v1098, %v1057
          %v1127 = vmul.f32 %v1098, %v1058
          %v1128 = vmul.f32 %v1098, %v1059
          %v1129 = vmul.f32 %v1098, %v1060
          %v1130 = vmul.f32 %v1098, %v1061
          %v1131 = vmul.f32 %v1098, %v1062
          %v1132 = vmul.f32 %v1098, %v1063
          %v1133 = vadd.f32 %v1117, %v1125
          %v1134 = vadd.f32 %v1118, %v1126
          %v1135 = vadd.f32 %v1119, %v1127
          %v1136 = vadd.f32 %v1120, %v1128
          %v1137 = vadd.f32 %v1121, %v1129
          %v1138 = vadd.f32 %v1122, %v1130
          %v1139 = vadd.f32 %v1123, %v1131
          %v1140 = vadd.f32 %v1124, %v1132
          %v1141 = vmul.f32 %v1099, 0.0
          %v1142 = vmul.f32 %v1099, %v1056
          %v1143 = vmul.f32 %v1099, %v1057
          %v1144 = vmul.f32 %v1099, %v1058
          %v1145 = vmul.f32 %v1099, %v1059
          %v1146 = vmul.f32 %v1099, %v1060
          %v1147 = vmul.f32 %v1099, %v1061
          %v1148 = vmul.f32 %v1099, %v1062
          %v1149 = vadd.f32 %v1133, %v1141
          %v1150 = vadd.f32 %v1134, %v1142
          %v1151 = vadd.f32 %v1135, %v1143
          %v1152 = vadd.f32 %v1136, %v1144
          %v1153 = vadd.f32 %v1137, %v1145
          %v1154 = vadd.f32 %v1138, %v1146
          %v1155 = vadd.f32 %v1139, %v1147
          %v1156 = vadd.f32 %v1140, %v1148
          %v1157 = vmul.f32 %v1100, %v1057
          %v1158 = vmul.f32 %v1100, %v1058
          %v1159 = vmul.f32 %v1100, %v1059
          %v1160 = vmul.f32 %v1100, %v1060
          %v1161 = vmul.f32 %v1100, %v1061
          %v1162 = vmul.f32 %v1100, %v1062
          %v1163 = vmul.f32 %v1100, %v1063
          %v1164 = vmul.f32 %v1100, 0.0
          %v1165 = vadd.f32 %v1149, %v1157
          %v1166 = vadd.f32 %v1150, %v1158
          %v1167 = vadd.f32 %v1151, %v1159
          %v1168 = vadd.f32 %v1152, %v1160
          %v1169 = vadd.f32 %v1153, %v1161
          %v1170 = vadd.f32 %v1154, %v1162
          %v1171 = vadd.f32 %v1155, %v1163
          %v1172 = vadd.f32 %v1156, %v1164
          %v1173 = vmul.f32 %v1101, %v1116
          %v1174 = vadd.f32 %v1165, %v1173
          %v1175 = vadd.f32 %v1166, %v1173
          %v1176 = vadd.f32 %v1167, %v1173
          %v1177 = vadd.f32 %v1168, %v1173
          %v1178 = vadd.f32 %v1169, %v1173
          %v1179 = vadd.f32 %v1170, %v1173
          %v1180 = vadd.f32 %v1171, %v1173
          %v1181 = vadd.f32 %v1172, %v1173
          %s1182 = scalar_lea.vmem [#allocation3], %s1064
          %v1183 = vld [vmem:[%s1182] sm:$0x1]
          %v1184 = vld [vmem:[%s1182 + $0x10] sm:$0x1]
          %v1185 = vld [vmem:[%s1182 + $0x20] sm:$0x1]
          %v1186 = vld [vmem:[%s1182 + $0x30] sm:$0x1]
          %v1187 = vld [vmem:[%s1182 + $0x40] sm:$0x1]
          %v1188 = vld [vmem:[%s1182 + $0x50] sm:$0x1]
          %v1189 = vld [vmem:[%s1182 + $0x60] sm:$0x1]
          %v1190 = vld [vmem:[%s1182 + $0x70] sm:$0x1]
          %v1191 = vmax.f32 %v1183, %v1174
          %v1192 = vmax.f32 %v1184, %v1175
          %v1193 = vmax.f32 %v1185, %v1176
          %v1194 = vmax.f32 %v1186, %v1177
          %v1195 = vmax.f32 %v1187, %v1178
          %v1196 = vmax.f32 %v1188, %v1179
          %v1197 = vmax.f32 %v1189, %v1180
          %v1198 = vmax.f32 %v1190, %v1181
          %1199 = vst.msk [vmem:[%s1182] sm:$0x1] %vm1085, %v1191
          %1200 = vst.msk [vmem:[%s1182 + $0x10] sm:$0x1] %vm1085, %v1192
          %1201 = vst.msk [vmem:[%s1182 + $0x20] sm:$0x1] %vm1085, %v1193
          %1202 = vst.msk [vmem:[%s1182 + $0x30] sm:$0x1] %vm1085, %v1194
          %1203 = vst.msk [vmem:[%s1182 + $0x40] sm:$0x1] %vm1085, %v1195
          %1204 = vst.msk [vmem:[%s1182 + $0x50] sm:$0x1] %vm1085, %v1196
          %1205 = vst.msk [vmem:[%s1182 + $0x60] sm:$0x1] %vm1085, %v1197
          %1206 = vst.msk [vmem:[%s1182 + $0x70] sm:$0x1] %vm1085, %v1198
        $region79: #{tpu_custom_call.1} parent=39 // loop_footer
          %s1055 = sadd.s32 1, %s1051
        $region80: #{tpu_custom_call.1} parent=39 // loop_footer_branch
          %1050 = sbr.rel target = $region76
        $region81: #{tpu_custom_call.1} parent=39 // loop_exit
          _
        loop: start=0, step=1, limit=8
        $region82: #{tpu_custom_call.1} parent=39 // loop_pre_header
          _
        $region83: #{tpu_custom_call.1} parent=39 // loop_header
          %s1208 = sphi 0, %s1212
          %p1209 = scmp.ge.s32.totalorder %s1208, 8
        $region84: #{tpu_custom_call.1} parent=39 // loop_header_branch
          %1211 = sbr.rel (%p1209) target = $region88
        $region85: #{tpu_custom_call.1} parent=39 // loop_body
          %s1213 = smul.u32 %s1208, 16
          %s1214 = scalar_lea.vmem [#allocation3], %s1213
          %v1215 = vld [vmem:[%s1214] sm:$0xff]
          %v1216 = vld [vmem:[%s1214 + $0x8] sm:$0xff]
          %1217 = vxpose.xlu0.b32.start [1/16] %v1215, 128
          %1218 = vxpose.xlu0.b32.cont [2/16] %v1216, 128
          %1219 = vxpose.xlu0.b32.cont [3/16] 0.0, 128
          %1220 = vxpose.xlu0.b32.cont [4/16] 0.0, 128
          %1221 = vxpose.xlu0.b32.cont [5/16] 0.0, 128
          %1222 = vxpose.xlu0.b32.cont [6/16] 0.0, 128
          %1223 = vxpose.xlu0.b32.cont [7/16] 0.0, 128
          %1224 = vxpose.xlu0.b32.cont [8/16] 0.0, 128
          %1225 = vxpose.xlu0.b32.cont [9/16] 0.0, 128
          %1226 = vxpose.xlu0.b32.cont [10/16] 0.0, 128
          %1227 = vxpose.xlu0.b32.cont [11/16] 0.0, 128
          %1228 = vxpose.xlu0.b32.cont [12/16] 0.0, 128
          %1229 = vxpose.xlu0.b32.cont [13/16] 0.0, 128
          %1230 = vxpose.xlu0.b32.cont [14/16] 0.0, 128
          %1231 = vxpose.xlu0.b32.cont [15/16] 0.0, 128
          %1232 = vxpose.xlu0.b32.end [16/16] 0.0, 128
          %v1233 = vpop.trf.xlu0
          %v1234 = vpop.trf.xlu0
          %v1235 = vpop.trf.xlu0
          %v1236 = vpop.trf.xlu0
          %v1237 = vpop.trf.xlu0
          %v1238 = vpop.trf.xlu0
          %v1239 = vpop.trf.xlu0
          %v1240 = vpop.trf.xlu0
          %v1241 = vpop.trf.xlu0
          %v1242 = vpop.trf.xlu0
          %v1243 = vpop.trf.xlu0
          %v1244 = vpop.trf.xlu0
          %v1245 = vpop.trf.xlu0
          %v1246 = vpop.trf.xlu0
          %v1247 = vpop.trf.xlu0
          %v1248 = vpop.trf.xlu0
          %s1249 = scalar_lea.vmem %s476, %s1213 [#allocation14]
          %1250 = vst.msk [vmem:[%s1249] sm:$0xff] %vm571, %v1233
          %1251 = vst.msk [vmem:[%s1249 + $0x8] sm:$0xff] %vm571, %v1234
        $region86: #{tpu_custom_call.1} parent=39 // loop_footer
          %s1212 = sadd.s32 1, %s1208
        $region87: #{tpu_custom_call.1} parent=39 // loop_footer_branch
          %1207 = sbr.rel target = $region83
        $region88: #{tpu_custom_call.1} parent=39 // loop_exit
          _
        loop: start=0, step=1, limit=16
        $region89: #{tpu_custom_call.1} parent=39 // loop_pre_header
          _
        $region90: #{tpu_custom_call.1} parent=39 // loop_header
          %s1253 = sphi 0, %s1257
          %p1254 = scmp.ge.s32.totalorder %s1253, 16
          %v1258 = vphi 0.0, %v1375
          %v1259 = vphi 0.0, %v1376
          %v1260 = vphi 0.0, %v1377
          %v1261 = vphi 0.0, %v1378
          %v1262 = vphi 0.0, %v1379
          %v1263 = vphi 0.0, %v1380
          %v1264 = vphi 0.0, %v1381
          %v1265 = vphi 0.0, %v1382
        $region91: #{tpu_custom_call.1} parent=39 // loop_header_branch
          %1256 = sbr.rel (%p1254) target = $region95
        $region92: #{tpu_custom_call.1} parent=39 // loop_body
          %s1266 = scalar_lea.vmem %s394, %s1253 [#allocation5]
          %v1267 = vld [vmem:[%s1266] sm:$0x1]
          %v1268 = vld [vmem:[%s1266 + $0x10] sm:$0x1]
          %v1269 = vld [vmem:[%s1266 + $0x20] sm:$0x1]
          %v1270 = vld [vmem:[%s1266 + $0x30] sm:$0x1]
          %v1271 = vld [vmem:[%s1266 + $0x40] sm:$0x1]
          %v1272 = vld [vmem:[%s1266 + $0x50] sm:$0x1]
          %v1273 = vld [vmem:[%s1266 + $0x60] sm:$0x1]
          %v1274 = vld [vmem:[%s1266 + $0x70] sm:$0x1]
          %s1275 = scalar_lea.vmem %s421, %s1253 [#allocation11]
          %v1276 = vld [vmem:[%s1275] sm:$0x1]
          %v1277 = vld [vmem:[%s1275 + $0x10] sm:$0x1]
          %v1278 = vld [vmem:[%s1275 + $0x20] sm:$0x1]
          %v1279 = vld [vmem:[%s1275 + $0x30] sm:$0x1]
          %v1280 = vld [vmem:[%s1275 + $0x40] sm:$0x1]
          %v1281 = vand.u32 2147483647, %v1276
          %v1282 = vand.u32 2147483647, %v1277
          %v1283 = vand.u32 2147483647, %v1278
          %v1284 = vand.u32 2147483647, %v1279
          %v1285 = vand.u32 2147483647, %v1280
          %vm1286 = vcmask 122880
          %v1287 = vsel %vm1286, %v1281, 0.0
          %v1288 = vsel %vm1286, %v1282, 0.0
          %v1289 = vadd.f32 %v1287, %v1288
          %v1290 = vsel %vm1286, %v1283, 0.0
          %v1291 = vadd.f32 %v1289, %v1290
          %v1292 = vsel %vm1286, %v1284, 0.0
          %v1293 = vadd.f32 %v1291, %v1292
          %v1294 = vsel %vm1286, %v1285, 0.0
          %v1295 = vadd.f32 %v1293, %v1294
          %v1296 = vmax.f32 %v1295, 1e-12
          %v1297 = vrcp.pop %v1296
          %v1298 = vmul.f32 %v1276, %v1297
          %v1299 = vmul.f32 %v1277, %v1297
          %v1300 = vmul.f32 %v1278, %v1297
          %v1301 = vmul.f32 %v1279, %v1297
          %v1302 = vmul.f32 %v1280, %v1297
          %v1303 = vsel %vm1286, %v1258, -inf
          %v1304 = vsel %vm1286, %v1259, -inf
          %v1305 = vsel %vm1286, %v1260, -inf
          %v1306 = vsel %vm1286, %v1261, -inf
          %v1307 = vsel %vm1286, %v1262, -inf
          %v1308 = vmax.f32 %v1303, %v1307
          %v1309 = vsel %vm1286, %v1263, -inf
          %v1310 = vmax.f32 %v1304, %v1309
          %v1311 = vsel %vm1286, %v1264, -inf
          %v1312 = vmax.f32 %v1305, %v1311
          %v1313 = vsel %vm1286, %v1265, -inf
          %v1314 = vmax.f32 %v1306, %v1313
          %v1315 = vmax.f32 %v1308, %v1310
          %v1316 = vmax.f32 %v1312, %v1314
          %v1317 = vmax.f32 %v1315, %v1316
          %v1318 = vmul.f32 %v1298, %v1267
          %v1319 = vmul.f32 %v1298, %v1268
          %v1320 = vmul.f32 %v1298, %v1269
          %v1321 = vmul.f32 %v1298, %v1270
          %v1322 = vmul.f32 %v1298, %v1271
          %v1323 = vmul.f32 %v1298, %v1272
          %v1324 = vmul.f32 %v1298, %v1273
          %v1325 = vmul.f32 %v1298, %v1274
          %v1326 = vmul.f32 %v1299, %v1258
          %v1327 = vmul.f32 %v1299, %v1259
          %v1328 = vmul.f32 %v1299, %v1260
          %v1329 = vmul.f32 %v1299, %v1261
          %v1330 = vmul.f32 %v1299, %v1262
          %v1331 = vmul.f32 %v1299, %v1263
          %v1332 = vmul.f32 %v1299, %v1264
          %v1333 = vmul.f32 %v1299, %v1265
          %v1334 = vadd.f32 %v1318, %v1326
          %v1335 = vadd.f32 %v1319, %v1327
          %v1336 = vadd.f32 %v1320, %v1328
          %v1337 = vadd.f32 %v1321, %v1329
          %v1338 = vadd.f32 %v1322, %v1330
          %v1339 = vadd.f32 %v1323, %v1331
          %v1340 = vadd.f32 %v1324, %v1332
          %v1341 = vadd.f32 %v1325, %v1333
          %v1342 = vmul.f32 %v1300, 0.0
          %v1343 = vmul.f32 %v1300, %v1258
          %v1344 = vmul.f32 %v1300, %v1259
          %v1345 = vmul.f32 %v1300, %v1260
          %v1346 = vmul.f32 %v1300, %v1261
          %v1347 = vmul.f32 %v1300, %v1262
          %v1348 = vmul.f32 %v1300, %v1263
          %v1349 = vmul.f32 %v1300, %v1264
          %v1350 = vadd.f32 %v1334, %v1342
          %v1351 = vadd.f32 %v1335, %v1343
          %v1352 = vadd.f32 %v1336, %v1344
          %v1353 = vadd.f32 %v1337, %v1345
          %v1354 = vadd.f32 %v1338, %v1346
          %v1355 = vadd.f32 %v1339, %v1347
          %v1356 = vadd.f32 %v1340, %v1348
          %v1357 = vadd.f32 %v1341, %v1349
          %v1358 = vmul.f32 %v1301, %v1259
          %v1359 = vmul.f32 %v1301, %v1260
          %v1360 = vmul.f32 %v1301, %v1261
          %v1361 = vmul.f32 %v1301, %v1262
          %v1362 = vmul.f32 %v1301, %v1263
          %v1363 = vmul.f32 %v1301, %v1264
          %v1364 = vmul.f32 %v1301, %v1265
          %v1365 = vmul.f32 %v1301, 0.0
          %v1366 = vadd.f32 %v1350, %v1358
          %v1367 = vadd.f32 %v1351, %v1359
          %v1368 = vadd.f32 %v1352, %v1360
          %v1369 = vadd.f32 %v1353, %v1361
          %v1370 = vadd.f32 %v1354, %v1362
          %v1371 = vadd.f32 %v1355, %v1363
          %v1372 = vadd.f32 %v1356, %v1364
          %v1373 = vadd.f32 %v1357, %v1365
          %v1374 = vmul.f32 %v1302, %v1317
          %v1375 = vadd.f32 %v1366, %v1374
          %v1376 = vadd.f32 %v1367, %v1374
          %v1377 = vadd.f32 %v1368, %v1374
          %v1378 = vadd.f32 %v1369, %v1374
          %v1379 = vadd.f32 %v1370, %v1374
          %v1380 = vadd.f32 %v1371, %v1374
          %v1381 = vadd.f32 %v1372, %v1374
          %v1382 = vadd.f32 %v1373, %v1374
          %s1383 = scalar_lea.vmem %s476, %s1253 [#allocation14]
          %v1384 = vld [vmem:[%s1383] sm:$0x1]
          %v1385 = vld [vmem:[%s1383 + $0x10] sm:$0x1]
          %v1386 = vld [vmem:[%s1383 + $0x20] sm:$0x1]
          %v1387 = vld [vmem:[%s1383 + $0x30] sm:$0x1]
          %v1388 = vld [vmem:[%s1383 + $0x40] sm:$0x1]
          %v1389 = vld [vmem:[%s1383 + $0x50] sm:$0x1]
          %v1390 = vld [vmem:[%s1383 + $0x60] sm:$0x1]
          %v1391 = vld [vmem:[%s1383 + $0x70] sm:$0x1]
          %v1392 = vmax.f32 %v1384, %v1375
          %v1393 = vmax.f32 %v1385, %v1376
          %v1394 = vmax.f32 %v1386, %v1377
          %v1395 = vmax.f32 %v1387, %v1378
          %v1396 = vmax.f32 %v1388, %v1379
          %v1397 = vmax.f32 %v1389, %v1380
          %v1398 = vmax.f32 %v1390, %v1381
          %v1399 = vmax.f32 %v1391, %v1382
          %1400 = vst.msk [vmem:[%s1383] sm:$0x1] %vm1286, %v1392
          %1401 = vst.msk [vmem:[%s1383 + $0x10] sm:$0x1] %vm1286, %v1393
          %1402 = vst.msk [vmem:[%s1383 + $0x20] sm:$0x1] %vm1286, %v1394
          %1403 = vst.msk [vmem:[%s1383 + $0x30] sm:$0x1] %vm1286, %v1395
          %1404 = vst.msk [vmem:[%s1383 + $0x40] sm:$0x1] %vm1286, %v1396
          %1405 = vst.msk [vmem:[%s1383 + $0x50] sm:$0x1] %vm1286, %v1397
          %1406 = vst.msk [vmem:[%s1383 + $0x60] sm:$0x1] %vm1286, %v1398
          %1407 = vst.msk [vmem:[%s1383 + $0x70] sm:$0x1] %vm1286, %v1399
        $region93: #{tpu_custom_call.1} parent=39 // loop_footer
          %s1257 = sadd.s32 1, %s1253
        $region94: #{tpu_custom_call.1} parent=39 // loop_footer_branch
          %1252 = sbr.rel target = $region90
        $region95: #{tpu_custom_call.1} parent=39 // loop_exit
          _
        loop: start=0, step=1, limit=16
        $region96: #{tpu_custom_call.1} parent=39 // loop_pre_header
          _
        $region97: #{tpu_custom_call.1} parent=39 // loop_header
          %s1409 = sphi 0, %s1413
          %p1410 = scmp.ge.s32.totalorder %s1409, 16
          %v1414 = vphi 0.0, %v1534
          %v1415 = vphi 0.0, %v1535
          %v1416 = vphi 0.0, %v1536
          %v1417 = vphi 0.0, %v1537
          %v1418 = vphi 0.0, %v1538
          %v1419 = vphi 0.0, %v1539
          %v1420 = vphi 0.0, %v1540
          %v1421 = vphi 0.0, %v1541
          %v1422 = vphi 0.0, %v1582
          %v1423 = vphi 0.0, %v1606
        $region98: #{tpu_custom_call.1} parent=39 // loop_header_branch
          %1412 = sbr.rel (%p1410) target = $region102
        $region99: #{tpu_custom_call.1} parent=39 // loop_body
          %s1424 = ssub.s32 15, %s1409
          %s1425 = scalar_lea.vmem %s394, %s1424 [#allocation5]
          %v1426 = vld [vmem:[%s1425] sm:$0x1]
          %v1427 = vld [vmem:[%s1425 + $0x10] sm:$0x1]
          %v1428 = vld [vmem:[%s1425 + $0x20] sm:$0x1]
          %v1429 = vld [vmem:[%s1425 + $0x30] sm:$0x1]
          %v1430 = vld [vmem:[%s1425 + $0x40] sm:$0x1]
          %v1431 = vld [vmem:[%s1425 + $0x50] sm:$0x1]
          %v1432 = vld [vmem:[%s1425 + $0x60] sm:$0x1]
          %v1433 = vld [vmem:[%s1425 + $0x70] sm:$0x1]
          %s1434 = scalar_lea.vmem %s430, %s1424 [#allocation13]
          %v1435 = vld [vmem:[%s1434] sm:$0x1]
          %v1436 = vld [vmem:[%s1434 + $0x10] sm:$0x1]
          %v1437 = vld [vmem:[%s1434 + $0x20] sm:$0x1]
          %v1438 = vld [vmem:[%s1434 + $0x30] sm:$0x1]
          %v1439 = vld [vmem:[%s1434 + $0x40] sm:$0x1]
          %v1440 = vand.u32 2147483647, %v1435
          %v1441 = vand.u32 2147483647, %v1436
          %v1442 = vand.u32 2147483647, %v1437
          %v1443 = vand.u32 2147483647, %v1438
          %v1444 = vand.u32 2147483647, %v1439
          %vm1445 = vcmask 122880
          %v1446 = vsel %vm1445, %v1440, 0.0
          %v1447 = vsel %vm1445, %v1441, 0.0
          %v1448 = vadd.f32 %v1446, %v1447
          %v1449 = vsel %vm1445, %v1442, 0.0
          %v1450 = vadd.f32 %v1448, %v1449
          %v1451 = vsel %vm1445, %v1443, 0.0
          %v1452 = vadd.f32 %v1450, %v1451
          %v1453 = vsel %vm1445, %v1444, 0.0
          %v1454 = vadd.f32 %v1452, %v1453
          %v1455 = vmax.f32 %v1454, 1e-12
          %v1456 = vrcp.pop %v1455
          %v1457 = vmul.f32 %v1435, %v1456
          %v1458 = vmul.f32 %v1436, %v1456
          %v1459 = vmul.f32 %v1437, %v1456
          %v1460 = vmul.f32 %v1438, %v1456
          %v1461 = vmul.f32 %v1439, %v1456
          %v1462 = vsel %vm1445, %v1414, -inf
          %v1463 = vsel %vm1445, %v1415, -inf
          %v1464 = vsel %vm1445, %v1416, -inf
          %v1465 = vsel %vm1445, %v1417, -inf
          %v1466 = vsel %vm1445, %v1418, -inf
          %v1467 = vmax.f32 %v1462, %v1466
          %v1468 = vsel %vm1445, %v1419, -inf
          %v1469 = vmax.f32 %v1463, %v1468
          %v1470 = vsel %vm1445, %v1420, -inf
          %v1471 = vmax.f32 %v1464, %v1470
          %v1472 = vsel %vm1445, %v1421, -inf
          %v1473 = vmax.f32 %v1465, %v1472
          %v1474 = vmax.f32 %v1467, %v1469
          %v1475 = vmax.f32 %v1471, %v1473
          %v1476 = vmax.f32 %v1474, %v1475
          %v1477 = vmul.f32 %v1457, %v1426
          %v1478 = vmul.f32 %v1457, %v1427
          %v1479 = vmul.f32 %v1457, %v1428
          %v1480 = vmul.f32 %v1457, %v1429
          %v1481 = vmul.f32 %v1457, %v1430
          %v1482 = vmul.f32 %v1457, %v1431
          %v1483 = vmul.f32 %v1457, %v1432
          %v1484 = vmul.f32 %v1457, %v1433
          %v1485 = vmul.f32 %v1458, %v1414
          %v1486 = vmul.f32 %v1458, %v1415
          %v1487 = vmul.f32 %v1458, %v1416
          %v1488 = vmul.f32 %v1458, %v1417
          %v1489 = vmul.f32 %v1458, %v1418
          %v1490 = vmul.f32 %v1458, %v1419
          %v1491 = vmul.f32 %v1458, %v1420
          %v1492 = vmul.f32 %v1458, %v1421
          %v1493 = vadd.f32 %v1477, %v1485
          %v1494 = vadd.f32 %v1478, %v1486
          %v1495 = vadd.f32 %v1479, %v1487
          %v1496 = vadd.f32 %v1480, %v1488
          %v1497 = vadd.f32 %v1481, %v1489
          %v1498 = vadd.f32 %v1482, %v1490
          %v1499 = vadd.f32 %v1483, %v1491
          %v1500 = vadd.f32 %v1484, %v1492
          %v1501 = vmul.f32 %v1459, 0.0
          %v1502 = vmul.f32 %v1459, %v1414
          %v1503 = vmul.f32 %v1459, %v1415
          %v1504 = vmul.f32 %v1459, %v1416
          %v1505 = vmul.f32 %v1459, %v1417
          %v1506 = vmul.f32 %v1459, %v1418
          %v1507 = vmul.f32 %v1459, %v1419
          %v1508 = vmul.f32 %v1459, %v1420
          %v1509 = vadd.f32 %v1493, %v1501
          %v1510 = vadd.f32 %v1494, %v1502
          %v1511 = vadd.f32 %v1495, %v1503
          %v1512 = vadd.f32 %v1496, %v1504
          %v1513 = vadd.f32 %v1497, %v1505
          %v1514 = vadd.f32 %v1498, %v1506
          %v1515 = vadd.f32 %v1499, %v1507
          %v1516 = vadd.f32 %v1500, %v1508
          %v1517 = vmul.f32 %v1460, %v1415
          %v1518 = vmul.f32 %v1460, %v1416
          %v1519 = vmul.f32 %v1460, %v1417
          %v1520 = vmul.f32 %v1460, %v1418
          %v1521 = vmul.f32 %v1460, %v1419
          %v1522 = vmul.f32 %v1460, %v1420
          %v1523 = vmul.f32 %v1460, %v1421
          %v1524 = vmul.f32 %v1460, 0.0
          %v1525 = vadd.f32 %v1509, %v1517
          %v1526 = vadd.f32 %v1510, %v1518
          %v1527 = vadd.f32 %v1511, %v1519
          %v1528 = vadd.f32 %v1512, %v1520
          %v1529 = vadd.f32 %v1513, %v1521
          %v1530 = vadd.f32 %v1514, %v1522
          %v1531 = vadd.f32 %v1515, %v1523
          %v1532 = vadd.f32 %v1516, %v1524
          %v1533 = vmul.f32 %v1461, %v1476
          %v1534 = vadd.f32 %v1525, %v1533
          %v1535 = vadd.f32 %v1526, %v1533
          %v1536 = vadd.f32 %v1527, %v1533
          %v1537 = vadd.f32 %v1528, %v1533
          %v1538 = vadd.f32 %v1529, %v1533
          %v1539 = vadd.f32 %v1530, %v1533
          %v1540 = vadd.f32 %v1531, %v1533
          %v1541 = vadd.f32 %v1532, %v1533
          %s1542 = scalar_lea.vmem %s476, %s1424 [#allocation14]
          %v1543 = vld [vmem:[%s1542] sm:$0x1]
          %v1544 = vld [vmem:[%s1542 + $0x10] sm:$0x1]
          %v1545 = vld [vmem:[%s1542 + $0x20] sm:$0x1]
          %v1546 = vld [vmem:[%s1542 + $0x30] sm:$0x1]
          %v1547 = vld [vmem:[%s1542 + $0x40] sm:$0x1]
          %v1548 = vld [vmem:[%s1542 + $0x50] sm:$0x1]
          %v1549 = vld [vmem:[%s1542 + $0x60] sm:$0x1]
          %v1550 = vld [vmem:[%s1542 + $0x70] sm:$0x1]
          %v1551 = vmax.f32 %v1543, %v1534
          %v1552 = vmax.f32 %v1544, %v1535
          %v1553 = vmax.f32 %v1545, %v1536
          %v1554 = vmax.f32 %v1546, %v1537
          %v1555 = vmax.f32 %v1547, %v1538
          %v1556 = vmax.f32 %v1548, %v1539
          %v1557 = vmax.f32 %v1549, %v1540
          %v1558 = vmax.f32 %v1550, %v1541
          %1559 = vst.msk [vmem:[%s1542] sm:$0x1] %vm1445, %v1551
          %1560 = vst.msk [vmem:[%s1542 + $0x10] sm:$0x1] %vm1445, %v1552
          %1561 = vst.msk [vmem:[%s1542 + $0x20] sm:$0x1] %vm1445, %v1553
          %1562 = vst.msk [vmem:[%s1542 + $0x30] sm:$0x1] %vm1445, %v1554
          %1563 = vst.msk [vmem:[%s1542 + $0x40] sm:$0x1] %vm1445, %v1555
          %1564 = vst.msk [vmem:[%s1542 + $0x50] sm:$0x1] %vm1445, %v1556
          %1565 = vst.msk [vmem:[%s1542 + $0x60] sm:$0x1] %vm1445, %v1557
          %1566 = vst.msk [vmem:[%s1542 + $0x70] sm:$0x1] %vm1445, %v1558
          %v1567 = vsel %vm1445, %v1551, 0.0
          %v1568 = vsel %vm1445, %v1552, 0.0
          %v1569 = vadd.f32 %v1567, %v1568
          %v1570 = vsel %vm1445, %v1553, 0.0
          %v1571 = vadd.f32 %v1569, %v1570
          %v1572 = vsel %vm1445, %v1554, 0.0
          %v1573 = vadd.f32 %v1571, %v1572
          %v1574 = vsel %vm1445, %v1555, 0.0
          %v1575 = vadd.f32 %v1573, %v1574
          %v1576 = vsel %vm1445, %v1556, 0.0
          %v1577 = vadd.f32 %v1575, %v1576
          %v1578 = vsel %vm1445, %v1557, 0.0
          %v1579 = vadd.f32 %v1577, %v1578
          %v1580 = vsel %vm1445, %v1558, 0.0
          %v1581 = vadd.f32 %v1579, %v1580
          %v1582 = vadd.f32 %v1422, %v1581
          %v1583 = vmul.f32 %v1551, %v1551
          %v1584 = vmul.f32 %v1552, %v1552
          %v1585 = vmul.f32 %v1553, %v1553
          %v1586 = vmul.f32 %v1554, %v1554
          %v1587 = vmul.f32 %v1555, %v1555
          %v1588 = vmul.f32 %v1556, %v1556
          %v1589 = vmul.f32 %v1557, %v1557
          %v1590 = vmul.f32 %v1558, %v1558
          %v1591 = vsel %vm1445, %v1583, 0.0
          %v1592 = vsel %vm1445, %v1584, 0.0
          %v1593 = vadd.f32 %v1591, %v1592
          %v1594 = vsel %vm1445, %v1585, 0.0
          %v1595 = vadd.f32 %v1593, %v1594
          %v1596 = vsel %vm1445, %v1586, 0.0
          %v1597 = vadd.f32 %v1595, %v1596
          %v1598 = vsel %vm1445, %v1587, 0.0
          %v1599 = vadd.f32 %v1597, %v1598
          %v1600 = vsel %vm1445, %v1588, 0.0
          %v1601 = vadd.f32 %v1599, %v1600
          %v1602 = vsel %vm1445, %v1589, 0.0
          %v1603 = vadd.f32 %v1601, %v1602
          %v1604 = vsel %vm1445, %v1590, 0.0
          %v1605 = vadd.f32 %v1603, %v1604
          %v1606 = vadd.f32 %v1423, %v1605
        $region100: #{tpu_custom_call.1} parent=39 // loop_footer
          %s1413 = sadd.s32 1, %s1409
        $region101: #{tpu_custom_call.1} parent=39 // loop_footer_branch
          %1408 = sbr.rel target = $region97
        $region102: #{tpu_custom_call.1} parent=39 // loop_exit
          _
        %vm1607 = vcmask 122880
        %v1608 = vsel %vm1607, %v1422, 0.0
        %1609 = vadd.xlane.f32.xlu0 %v1608
        %v1610 = vpop.xlane.xlu0 %1609
        %v1611 = vsel %vm1607, %v1423, 0.0
        %1612 = vadd.xlane.f32.xlu0 %v1611
        %v1613 = vpop.xlane.xlu0 %1612
        %1614 = vst [vmem:[%s483] sm:$0x1] %v1610
        %1615 = vst [vmem:[%s483 + $0x1] sm:$0x1] %v1613
        %s1616 = sand.u32 %s201, 1
        %s1617 = scalar_lea.sflag [#allocation7], %s1616
        %s1618 = sand.u32 %s201, 1
        %s1619 = smul.addr %s1618, 128
        %s1620 = scalar_lea.vmem [#allocation14], %s1619
        %s1621 = sand.u32 %s229, 1
        %s1622 = scalar_lea.sflag [#allocation16], %s1621
        %s1623 = sand.u32 %s229, 1
        %s1624 = smul.addr %s1623, 2
        %s1625 = scalar_lea.vmem [#allocation15], %s1624
        // Predicated region
        $region103: #{tpu_custom_call.1} parent=39 // pred_check
          %p1626 = pneg %p211
        $region104: #{tpu_custom_call.1} parent=39 // pred_check_branch
          %1628 = sbr.rel (%p1626) target = $region106
        $region105: #{tpu_custom_call.1} parent=39 // pred_region
          %s1630 = ssub.s32 2048, 2048
          %1631 = vsyncadd %s1617, %s1630
          %s1632 = smul.addr %s38, 16
          %s1633 = smul.addr %s37, 64
          %s1634 = sadd.s32 %s1632, %s1633
          %s1635 = smul.addr %s1634, 128
          %s1636 = scalar_lea.hbm %s5, %s1635
          %s1637 = sshll.u32 %s1620, 4
          %s1638 = int_to_ptr.vmem [resolvable:$true] %s1637
          %1643 = dma.vmem_to_hbm [thread:$0]  %s1638, 2048, %s1636, %s1617, 128, 128, 8
        $region106: #{tpu_custom_call.1} parent=39 // pred_fallthru
          _
        // Predicated region
        $region107: #{tpu_custom_call.1} parent=39 // pred_check
          %p1644 = pneg %p239
        $region108: #{tpu_custom_call.1} parent=39 // pred_check_branch
          %1646 = sbr.rel (%p1644) target = $region110
        $region109: #{tpu_custom_call.1} parent=39 // pred_region
          %s1648 = ssub.s32 32, 32
          %1649 = vsyncadd %s1622, %s1648
          %s1650 = smul.addr %s37, 4
          %s1651 = sadd.s32 %s38, %s1650
          %s1652 = smul.addr %s1651, 32
          %s1653 = scalar_lea.hbm %s6, %s1652
          %s1655 = sshll.u32 %s1625, 4
          %s1656 = int_to_ptr.vmem [resolvable:$true] %s1655
          %1658 = dma.vmem_to_hbm [thread:$0]  %s1656, 32, %s1653, %s1622
        $region110: #{tpu_custom_call.1} parent=39 // pred_fallthru
          _
      $region40: #{tpu_custom_call.1} parent=5 // pred_fallthru
        _
      %p1659 = scmp.le.s32.totalorder 2, %s28
      // Predicated region
      $region111: #{tpu_custom_call.1} parent=5 // pred_check
        %p1660 = pneg %p1659
      $region112: #{tpu_custom_call.1} parent=5 // pred_check_branch
        %1662 = sbr.rel (%p1660) target = $region114
      $region113: #{tpu_custom_call.1} parent=5 // pred_region
        %s1663 = ssub.s32 %s28, 2
        // Predicated region
        $region115: #{tpu_custom_call.1} parent=113 // pred_check
          %p1664 = pneg %p217
        $region116: #{tpu_custom_call.1} parent=113 // pred_check_branch
          %1666 = sbr.rel (%p1664) target = $region118
        $region117: #{tpu_custom_call.1} parent=113 // pred_region
          %s1667 = sand.u32 %s202, 1
          %s1668 = scalar_lea.sflag [#allocation7], %s1667
          %s1669 = sand.u32 %s202, 1
          %s1670 = smul.addr %s1669, 128
          %s1671 = scalar_lea.vmem [#allocation14], %s1670
          %1672 = dma.done %s1668, 2048
        $region118: #{tpu_custom_call.1} parent=113 // pred_fallthru
          _
        // Predicated region
        $region119: #{tpu_custom_call.1} parent=113 // pred_check
          %p1673 = pneg %p245
        $region120: #{tpu_custom_call.1} parent=113 // pred_check_branch
          %1675 = sbr.rel (%p1673) target = $region122
        $region121: #{tpu_custom_call.1} parent=113 // pred_region
          %s1676 = sand.u32 %s230, 1
          %s1677 = scalar_lea.sflag [#allocation16], %s1676
          %s1678 = sand.u32 %s230, 1
          %s1679 = smul.addr %s1678, 2
          %s1680 = scalar_lea.vmem [#allocation15], %s1679
          %1681 = dma.done %s1677, 32
        $region122: #{tpu_custom_call.1} parent=113 // pred_fallthru
          _
      $region114: #{tpu_custom_call.1} parent=5 // pred_fallthru
        _
    $region6: #{tpu_custom_call.1} parent=1 // loop_footer
      %s32 = sadd.s32 1, %s28
    $region7: #{tpu_custom_call.1} parent=1 // loop_footer_branch
      %27 = sbr.rel target = $region3
    $region8: #{tpu_custom_call.1} parent=1 // loop_exit
      _
    %1682 = vsyncpa [#allocation6], 1
    %s1683 = scalar_lea.sflag [#allocation6], 1
    %1684 = vsyncpa %s1683, 1
    %1685 = vsyncpa [#allocation9], 1
    %s1686 = scalar_lea.sflag [#allocation9], 1
    %1687 = vsyncpa %s1686, 1
    %1688 = vsyncpa [#allocation12], 1
    %s1689 = scalar_lea.sflag [#allocation12], 1
    %1690 = vsyncpa %s1689, 1
    %1691 = vsyncpa [#allocation7], 1
    %s1692 = scalar_lea.sflag [#allocation7], 1
    %1693 = vsyncpa %s1692, 1
    %1694 = vsyncpa [#allocation16], 1
    %s1695 = scalar_lea.sflag [#allocation16], 1
    %1696 = vsyncpa %s1695, 1

</llo_original>
